<compile_context>
chip_gen: v7x
topology: tpu7x:2x2x1
jax: 0.10.0
libtpu: 0.0.40
codegen_flags: <defaults>
</compile_context>

<pallas_src>
import functools

import jax
import jax.numpy as jnp
from jax.experimental import pallas as pl
from jax.experimental.pallas import tpu as pltpu


def _round_up(x, m):
    return ((x + m - 1) // m) * m


# --------------------------------------------------------------------------- #
# Pallas kernel: TB examples per grid step, lane-dense (C_pad/out_pad = 128).
# --------------------------------------------------------------------------- #
def tw_amg_kernel(img_ref, wemb_ref, temb_ref,
                  w_img_ref, b_img_ref,
                  w_word_ref, b_word_ref,
                  w_tag_ref, b_tag_ref,
                  wo_img_ref, wo_word_ref, wo_tag_ref, b_out_ref,
                  out_ref, *, n, compact_dim_true, emb_param_r):
    m_rows = img_ref.shape[0]          # TB * N
    tb = m_rows // n
    c_pad = w_img_ref.shape[-1]        # 128-lane-dense compact dim

    # Compact projections: one big (TB*N, D) x (D, C_pad) matmul each,
    # f32 accumulation on the MXU.  Operands may be bf16 (wrapper pre-cast).
    img_c = jnp.dot(img_ref[...], w_img_ref[...],
                    preferred_element_type=jnp.float32) + b_img_ref[...]     # (TB*N, Cp)
    word_c = jnp.dot(wemb_ref[...], w_word_ref[...],
                     preferred_element_type=jnp.float32) + b_word_ref[...]   # (TB*N, Cp)
    tag_c = jnp.dot(temb_ref[...], w_tag_ref[...],
                    preferred_element_type=jnp.float32) + b_tag_ref[...]     # (TB, Cp)

    img_c3 = img_c.reshape(tb, n, c_pad)
    word_c3 = word_c.reshape(tb, n, c_pad)

    # Tag-guided attention pooling over the N image features (softmax over N).
    # Scores kept 2-D (TB, N); scale uses the TRUE (unpadded) compact dim.
    scale = 1.0 / (compact_dim_true ** 0.5)
    scores = jnp.sum(img_c3 * tag_c[:, None, :], axis=-1) * scale            # (TB, N)
    m = jnp.max(scores, axis=1, keepdims=True)                               # (TB, 1)
    ex = jnp.exp(scores - m)                                                  # (TB, N)
    denom = jnp.sum(ex, axis=1, keepdims=True)                                # (TB, 1)
    numer = jnp.sum(ex[:, :, None] * img_c3, axis=1)                          # (TB, Cp)
    img_pooled = numer * pl.reciprocal(denom, approx=True)                    # (TB, Cp)

    # LSE pooling over the word axis (emb_pool_type='lse', r=emb_param_r),
    # numerically stabilized: max + (1/r) * log(mean(exp(r * (x - max)))).
    r = emb_param_r
    mw = jnp.max(word_c3, axis=1)                                             # (TB, Cp)
    word_pooled = mw + (1.0 / r) * jnp.log(
        jnp.mean(jnp.exp(r * (word_c3 - mw[:, None, :])), axis=1))            # (TB, Cp)

    # op='concat' + output linear, as a sum of three M=TB matmuls
    # (identical to concat([img, word, tag]) @ W_out + b_out; avoids an
    #  in-kernel lane-axis concat).  wo_* / b_out were zero-padded to a
    #  128-lane-dense out_pad, so this store is an unmasked lane-dense vst.
    fused = (jnp.dot(img_pooled, wo_img_ref[...], preferred_element_type=jnp.float32)
             + jnp.dot(word_pooled, wo_word_ref[...], preferred_element_type=jnp.float32)
             + jnp.dot(tag_c, wo_tag_ref[...], preferred_element_type=jnp.float32)
             + b_out_ref[...])                                                # (TB, out_pad)

    out_ref[...] = fused.astype(out_ref.dtype)


# --------------------------------------------------------------------------- #
# Weight preparation (once per forward): lane-dense padding + optional bf16.
# --------------------------------------------------------------------------- #
def _prepare_weights(params, *, matmul_in_dtype=None):
    compact_dim = params["w_img"].shape[-1]
    output_dim = params["b_out"].shape[-1]
    c_pad = _round_up(max(compact_dim, 128), 128)
    out_pad = _round_up(max(output_dim, 128), 128)
    pc = c_pad - compact_dim
    po = out_pad - output_dim

    w_img = jnp.pad(params["w_img"], ((0, 0), (0, pc)))
    w_word = jnp.pad(params["w_word"], ((0, 0), (0, pc)))
    w_tag = jnp.pad(params["w_tag"], ((0, 0), (0, pc)))
    b_img = jnp.pad(params["b_img"], ((0, 0), (0, pc)))
    b_word = jnp.pad(params["b_word"], ((0, 0), (0, pc)))
    b_tag = jnp.pad(params["b_tag"], ((0, 0), (0, pc)))
    wo_img = jnp.pad(params["wo_img"], ((0, pc), (0, po)))
    wo_word = jnp.pad(params["wo_word"], ((0, pc), (0, po)))
    wo_tag = jnp.pad(params["wo_tag"], ((0, pc), (0, po)))
    b_out = jnp.pad(params["b_out"], ((0, 0), (0, po)))

    if matmul_in_dtype is not None:
        # Pre-cast the big projection weights in HBM (pad-then-cast keeps the
        # padded columns exactly zero).  Elementwise / pooling math stays f32.
        w_img = w_img.astype(matmul_in_dtype)
        w_word = w_word.astype(matmul_in_dtype)

    return {
        "w_img": w_img, "b_img": b_img,
        "w_word": w_word, "b_word": b_word,
        "w_tag": w_tag, "b_tag": b_tag,
        "wo_img": wo_img, "wo_word": wo_word, "wo_tag": wo_tag, "b_out": b_out,
        "compact_dim": compact_dim, "c_pad": c_pad,
        "output_dim": output_dim, "out_pad": out_pad,
    }


# --------------------------------------------------------------------------- #
# Per-set wrapper: embedding gathers + flattening (glue), hot path in kernel.
# --------------------------------------------------------------------------- #
def tw_amg_forward_batched(params, prepared, images, word_ids, tag_ids, *,
                           emb_param_r, tb=128, matmul_in_dtype=None,
                           input_buffering=None):
    """images: (B, N, img_dim) f32; word_ids: (B, N) i32; tag_ids: (B, 1) i32."""
    B, N, img_dim = images.shape
    word_dim = params["word_embedding"].shape[-1]
    tag_dim = params["tag_embedding"].shape[-1]
    out_pad = prepared["out_pad"]
    output_dim = prepared["output_dim"]

    # TB: multiple of 8, clamped to the padded batch.  At real batch sizes use
    # TB=128+ so the MXU M dimension is filled and (on v7x) grid length >= 2.
    tb = max(8, min(_round_up(tb, 8), _round_up(B, 8)))
    B_pad = _round_up(B, tb)
    pad = B_pad - B
    if pad:
        images = jnp.pad(images, ((0, pad), (0, 0), (0, 0)))
        word_ids = jnp.pad(word_ids, ((0, pad), (0, 0)))
        tag_ids = jnp.pad(tag_ids, ((0, pad), (0, 0)))

    # Embedding gathers stay in the wrapper (negligible at these dims).
    # TODO(synk): at production vocab sizes, fuse the gathers into the kernel
    #             via scalar-prefetched ids + pl.Element row gather.
    word_emb = jnp.take(params["word_embedding"], word_ids, axis=0)          # (B_pad, N, Dw)
    tag_emb = jnp.take(params["tag_embedding"], tag_ids[:, 0], axis=0)       # (B_pad, Dt)

    # Pre-flatten (B, N) -> M rows in HBM (free metadata reshape), so the
    # kernel's matmuls see a natural (M, D) operand and no in-kernel reshape
    # of the inputs is needed.
    images2 = images.reshape(B_pad * N, img_dim)
    wemb2 = word_emb.reshape(B_pad * N, word_dim)

    if matmul_in_dtype is not None:
        # Wrapper-side cast: kernel DMAs bf16 bytes (halves activation traffic).
        images2 = images2.astype(matmul_in_dtype)
        wemb2 = wemb2.astype(matmul_in_dtype)

    kernel = functools.partial(tw_amg_kernel, n=N,
                               compact_dim_true=prepared["compact_dim"],
                               emb_param_r=float(emb_param_r))

    def act_spec(block_shape, index_map):
        if input_buffering is None:
            return pl.BlockSpec(block_shape, index_map)
        # v5e: deeper input buffering hides DMA better than bigger tiles.
        return pl.BlockSpec(block_shape, index_map,
                            pipeline_mode=pl.Buffered(input_buffering))

    # Constant-index weight blocks (index_map == (0,0) every step): no re-DMA.
    # TODO(synk): pl.Buffered(1) on these would halve their VMEM footprint at
    #             production Di/C sizes (negligible here).
    full2d = lambda a: pl.BlockSpec(a.shape, lambda i: (0, 0))

    weights = (prepared["w_img"], prepared["b_img"],
               prepared["w_word"], prepared["b_word"],
               prepared["w_tag"], prepared["b_tag"],
               prepared["wo_img"], prepared["wo_word"], prepared["wo_tag"],
               prepared["b_out"])

    # Explicit VMEM budget from actual dtypes; cap at 48 MiB (headroom on v7x).
    isz = lambda a: jnp.dtype(a.dtype).itemsize
    tile_bytes = (tb * N * img_dim * isz(images2)
                  + tb * N * word_dim * isz(wemb2)
                  + tb * tag_dim * isz(tag_emb)
                  + tb * out_pad * 4)
    weight_bytes = sum(int(w.size) * isz(w) for w in weights)
    vmem_limit = int(min(max(2 * (tile_bytes + weight_bytes) + (2 << 20),
                             16 * 2**20), 48 * 2**20))

    out = pl.pallas_call(
        kernel,
        out_shape=jax.ShapeDtypeStruct((B_pad, out_pad), jnp.float32),
        grid_spec=pltpu.PrefetchScalarGridSpec(
            num_scalar_prefetch=0,
            grid=(B_pad // tb,),
            in_specs=[
                act_spec((tb * N, img_dim), lambda i: (i, 0)),
                act_spec((tb * N, word_dim), lambda i: (i, 0)),
                act_spec((tb, tag_dim), lambda i: (i, 0)),
                full2d(prepared["w_img"]), full2d(prepared["b_img"]),
                full2d(prepared["w_word"]), full2d(prepared["b_word"]),
                full2d(prepared["w_tag"]), full2d(prepared["b_tag"]),
                full2d(prepared["wo_img"]), full2d(prepared["wo_word"]),
                full2d(prepared["wo_tag"]), full2d(prepared["b_out"]),
            ],
            out_specs=pl.BlockSpec((tb, out_pad), lambda i: (i, 0)),
        ),
        compiler_params=pltpu.CompilerParams(
            dimension_semantics=("parallel",),
            vmem_limit_bytes=vmem_limit),
    )(images2, wemb2, tag_emb, *weights)

    return out[:B, :output_dim]                                              # (B, output_dim)


def new_model_forward(params, query_tag, pos_tag, neg_tag,
                      query_image_set, pos_image_set, neg_image_set,
                      query_words, pos_words, neg_words, *,
                      emb_param_r, tb=128, matmul_in_dtype=None,
                      input_buffering=None):
    # No jnp.concatenate of the three activation sets (per review): three
    # per-set launches avoid a full extra HBM read+write of every activation;
    # the (tiny) weight blocks are padded/cast once and shared.
    prepared = _prepare_weights(params, matmul_in_dtype=matmul_in_dtype)
    run = functools.partial(tw_amg_forward_batched, params, prepared,
                            emb_param_r=emb_param_r, tb=tb,
                            matmul_in_dtype=matmul_in_dtype,
                            input_buffering=input_buffering)
    q_feat = run(query_image_set, query_words, query_tag)
    p_feat = run(pos_image_set, pos_words, pos_tag)
    n_feat = run(neg_image_set, neg_words, neg_tag)
    return q_feat, p_feat, n_feat


# --------------------------------------------------------------------------- #
# Pure-JAX reference (mirror of the kernel, unpadded) for correctness checking.
# --------------------------------------------------------------------------- #
def reference_instance(params, images, word_ids, tag_ids, *, emb_param_r):
    word_emb = jnp.take(params["word_embedding"], word_ids, axis=0)
    tag_emb = jnp.take(params["tag_embedding"], tag_ids[:, 0], axis=0)
    img_c = images @ params["w_img"] + params["b_img"]
    word_c = word_emb @ params["w_word"] + params["b_word"]
    tag_c = tag_emb @ params["w_tag"] + params["b_tag"]
    scale = 1.0 / (img_c.shape[-1] ** 0.5)
    scores = jnp.sum(img_c * tag_c[:, None, :], axis=-1) * scale
    attn = jax.nn.softmax(scores, axis=-1)
    img_pooled = jnp.sum(attn[..., None] * img_c, axis=1)
    r = float(emb_param_r)
    m = jnp.max(word_c, axis=1)
    word_pooled = m + (1.0 / r) * jnp.log(
        jnp.mean(jnp.exp(r * (word_c - m[:, None, :])), axis=1))
    return (img_pooled @ params["wo_img"] + word_pooled @ params["wo_word"]
            + tag_c @ params["wo_tag"] + params["b_out"])


# --------------------------------------------------------------------------- #
# Deterministic parameter construction.
# --------------------------------------------------------------------------- #
def make_params(key, *, img_dim, word_vocab_size, word_vocab_dim,
                tag_vocab_size, tag_vocab_dim, compact_dim, output_dim):
    ks = jax.random.split(key, 9)
    nrm = lambda k, s: (0.02 * jax.random.normal(k, s)).astype(jnp.float32)
    return {
        "word_embedding": nrm(ks[0], (word_vocab_size, word_vocab_dim)),
        "tag_embedding": nrm(ks[1], (tag_vocab_size, tag_vocab_dim)),
        "w_img": nrm(ks[2], (img_dim, compact_dim)),
        "b_img": jnp.zeros((1, compact_dim), jnp.float32),
        "w_word": nrm(ks[3], (word_vocab_dim, compact_dim)),
        "b_word": jnp.zeros((1, compact_dim), jnp.float32),
        "w_tag": nrm(ks[4], (tag_vocab_dim, compact_dim)),
        "b_tag": jnp.zeros((1, compact_dim), jnp.float32),
        "wo_img": nrm(ks[5], (compact_dim, output_dim)),
        "wo_word": nrm(ks[6], (compact_dim, output_dim)),
        "wo_tag": nrm(ks[7], (compact_dim, output_dim)),
        "b_out": nrm(ks[8], (1, output_dim)),
    }


if __name__ == "__main__":
    # Small shapes consistent with the module's forward signature.
    B, N = 2, 8
    IMG_DIM = 128
    WORD_VOCAB, WORD_DIM = 50, 32
    TAG_VOCAB, TAG_DIM = 20, 16
    COMPACT_DIM, OUTPUT_DIM = 32, 16
    EMB_PARAM_R = 6

    root = jax.random.PRNGKey(0)
    kp, k1, k2, k3, k4, k5, k6, k7, k8, k9 = jax.random.split(root, 10)

    params = make_params(kp, img_dim=IMG_DIM, word_vocab_size=WORD_VOCAB,
                         word_vocab_dim=WORD_DIM, tag_vocab_size=TAG_VOCAB,
                         tag_vocab_dim=TAG_DIM, compact_dim=COMPACT_DIM,
                         output_dim=OUTPUT_DIM)

    query_tag = jax.random.randint(k1, (B, 1), 0, TAG_VOCAB, dtype=jnp.int32)
    pos_tag = jax.random.randint(k2, (B, 1), 0, TAG_VOCAB, dtype=jnp.int32)
    neg_tag = jax.random.randint(k3, (B, 1), 0, TAG_VOCAB, dtype=jnp.int32)
    query_image_set = jax.random.normal(k4, (B, N, IMG_DIM), jnp.float32)
    pos_image_set = jax.random.normal(k5, (B, N, IMG_DIM), jnp.float32)
    neg_image_set = jax.random.normal(k6, (B, N, IMG_DIM), jnp.float32)
    query_words = jax.random.randint(k7, (B, N), 0, WORD_VOCAB, dtype=jnp.int32)
    pos_words = jax.random.randint(k8, (B, N), 0, WORD_VOCAB, dtype=jnp.int32)
    neg_words = jax.random.randint(k9, (B, N), 0, WORD_VOCAB, dtype=jnp.int32)

    # f32 path (matmul_in_dtype=None) for exact-ish reference comparison;
    # on v6e/v7x pass matmul_in_dtype=jnp.bfloat16 (wrapper-side pre-cast).
    fwd = jax.jit(functools.partial(new_model_forward,
                                    emb_param_r=EMB_PARAM_R, tb=128,
                                    matmul_in_dtype=None,
                                    input_buffering=None))
    q_feat, p_feat, n_feat = fwd(
        params, query_tag, pos_tag, neg_tag,
        query_image_set, pos_image_set, neg_image_set,
        query_words, pos_words, neg_words)
    jax.block_until_ready((q_feat, p_feat, n_feat))

    # Validate against the pure-JAX reference (approx reciprocal in-kernel ->
    # slightly relaxed tolerance).
    q_ref = reference_instance(params, query_image_set, query_words, query_tag,
                               emb_param_r=EMB_PARAM_R)
    p_ref = reference_instance(params, pos_image_set, pos_words, pos_tag,
                               emb_param_r=EMB_PARAM_R)
    n_ref = reference_instance(params, neg_image_set, neg_words, neg_tag,
                               emb_param_r=EMB_PARAM_R)
    ok = (jnp.allclose(q_feat, q_ref, atol=2e-3, rtol=1e-2)
          and jnp.allclose(p_feat, p_ref, atol=2e-3, rtol=1e-2)
          and jnp.allclose(n_feat, n_ref, atol=2e-3, rtol=1e-2))
    assert bool(ok), "Pallas kernel disagrees with reference"
    assert q_feat.shape == (B, OUTPUT_DIM)

    print("KERNEL_OK")
</pallas_src>

<mosaic_0001>
module attributes {stable_mosaic.version = 11 : i64} {
  func.func @tw_amg_kernel(%arg0: i32, %arg1: memref<64x128xf32, #tpu.memory_space<vmem>>, %arg2: memref<64x32xf32, #tpu.memory_space<vmem>>, %arg3: memref<8x16xf32, #tpu.memory_space<vmem>>, %arg4: memref<128x128xf32, #tpu.memory_space<vmem>>, %arg5: memref<1x128xf32, #tpu.memory_space<vmem>>, %arg6: memref<32x128xf32, #tpu.memory_space<vmem>>, %arg7: memref<1x128xf32, #tpu.memory_space<vmem>>, %arg8: memref<16x128xf32, #tpu.memory_space<vmem>>, %arg9: memref<1x128xf32, #tpu.memory_space<vmem>>, %arg10: memref<128x128xf32, #tpu.memory_space<vmem>>, %arg11: memref<128x128xf32, #tpu.memory_space<vmem>>, %arg12: memref<128x128xf32, #tpu.memory_space<vmem>>, %arg13: memref<1x128xf32, #tpu.memory_space<vmem>>, %arg14: memref<8x128xf32, #tpu.memory_space<vmem>>) attributes {dimension_semantics = [#tpu.dimension_semantics<parallel>], iteration_bounds = array<i64: 1>, scalar_prefetch = 0 : i64, scratch_operands = 0 : i64, tpu.core_type = #tpu.core_type<tc>, window_params = [{transform_indices = @transform_0, window_bounds = array<i64: 64, 128>}, {transform_indices = @transform_1, window_bounds = array<i64: 64, 32>}, {transform_indices = @transform_2, window_bounds = array<i64: 8, 16>}, {pipeline_mode = #tpu.pipeline_mode<synchronous>, transform_indices = @transform_3, window_bounds = array<i64: 128, 128>}, {pipeline_mode = #tpu.pipeline_mode<synchronous>, transform_indices = @transform_4, window_bounds = array<i64: 1, 128>}, {pipeline_mode = #tpu.pipeline_mode<synchronous>, transform_indices = @transform_5, window_bounds = array<i64: 32, 128>}, {pipeline_mode = #tpu.pipeline_mode<synchronous>, transform_indices = @transform_6, window_bounds = array<i64: 1, 128>}, {pipeline_mode = #tpu.pipeline_mode<synchronous>, transform_indices = @transform_7, window_bounds = array<i64: 16, 128>}, {pipeline_mode = #tpu.pipeline_mode<synchronous>, transform_indices = @transform_8, window_bounds = array<i64: 1, 128>}, {pipeline_mode = #tpu.pipeline_mode<synchronous>, transform_indices = @transform_9, window_bounds = array<i64: 128, 128>}, {pipeline_mode = #tpu.pipeline_mode<synchronous>, transform_indices = @transform_10, window_bounds = array<i64: 128, 128>}, {pipeline_mode = #tpu.pipeline_mode<synchronous>, transform_indices = @transform_11, window_bounds = array<i64: 128, 128>}, {pipeline_mode = #tpu.pipeline_mode<synchronous>, transform_indices = @transform_12, window_bounds = array<i64: 1, 128>}, {transform_indices = @transform_13, window_bounds = array<i64: 8, 128>}]} {
    %c0 = arith.constant 0 : index
    %c0_0 = arith.constant 0 : index
    %0 = vector.load %arg1[%c0, %c0_0] : memref<64x128xf32, #tpu.memory_space<vmem>>, vector<64x128xf32>
    %c0_1 = arith.constant 0 : index
    %c0_2 = arith.constant 0 : index
    %1 = vector.load %arg4[%c0_1, %c0_2] : memref<128x128xf32, #tpu.memory_space<vmem>>, vector<128x128xf32>
    %cst = arith.constant dense<0.000000e+00> : vector<64x128xf32>
    %2 = tpu.matmul %0, %1, %cst {dimension_numbers = #tpu.dot_dimension_numbers<[1], [0], [0], [1], [0, 0, 1, 1], [], []>} : vector<64x128xf32>, vector<128x128xf32>, vector<64x128xf32> -> vector<64x128xf32>
    %c0_3 = arith.constant 0 : index
    %c0_4 = arith.constant 0 : index
    %3 = vector.load %arg5[%c0_3, %c0_4] : memref<1x128xf32, #tpu.memory_space<vmem>>, vector<1x128xf32>
    %4 = vector.broadcast %3 : vector<1x128xf32> to vector<64x128xf32>
    %5 = arith.addf %2, %4 : vector<64x128xf32>
    %c0_5 = arith.constant 0 : index
    %c0_6 = arith.constant 0 : index
    %6 = vector.load %arg2[%c0_5, %c0_6] : memref<64x32xf32, #tpu.memory_space<vmem>>, vector<64x32xf32>
    %c0_7 = arith.constant 0 : index
    %c0_8 = arith.constant 0 : index
    %7 = vector.load %arg6[%c0_7, %c0_8] : memref<32x128xf32, #tpu.memory_space<vmem>>, vector<32x128xf32>
    %cst_9 = arith.constant dense<0.000000e+00> : vector<64x128xf32>
    %8 = tpu.matmul %6, %7, %cst_9 {dimension_numbers = #tpu.dot_dimension_numbers<[1], [0], [0], [1], [0, 0, 1, 1], [], []>} : vector<64x32xf32>, vector<32x128xf32>, vector<64x128xf32> -> vector<64x128xf32>
    %c0_10 = arith.constant 0 : index
    %c0_11 = arith.constant 0 : index
    %9 = vector.load %arg7[%c0_10, %c0_11] : memref<1x128xf32, #tpu.memory_space<vmem>>, vector<1x128xf32>
    %10 = vector.broadcast %9 : vector<1x128xf32> to vector<64x128xf32>
    %11 = arith.addf %8, %10 : vector<64x128xf32>
    %c0_12 = arith.constant 0 : index
    %c0_13 = arith.constant 0 : index
    %12 = vector.load %arg3[%c0_12, %c0_13] : memref<8x16xf32, #tpu.memory_space<vmem>>, vector<8x16xf32>
    %c0_14 = arith.constant 0 : index
    %c0_15 = arith.constant 0 : index
    %13 = vector.load %arg8[%c0_14, %c0_15] : memref<16x128xf32, #tpu.memory_space<vmem>>, vector<16x128xf32>
    %cst_16 = arith.constant dense<0.000000e+00> : vector<8x128xf32>
    %14 = tpu.matmul %12, %13, %cst_16 {dimension_numbers = #tpu.dot_dimension_numbers<[1], [0], [0], [1], [0, 0, 1, 1], [], []>} : vector<8x16xf32>, vector<16x128xf32>, vector<8x128xf32> -> vector<8x128xf32>
    %c0_17 = arith.constant 0 : index
    %c0_18 = arith.constant 0 : index
    %15 = vector.load %arg9[%c0_17, %c0_18] : memref<1x128xf32, #tpu.memory_space<vmem>>, vector<1x128xf32>
    %16 = vector.broadcast %15 : vector<1x128xf32> to vector<8x128xf32>
    %17 = arith.addf %14, %16 : vector<8x128xf32>
    %18 = vector.shape_cast %5 : vector<64x128xf32> to vector<8x8x128xf32>
    %19 = vector.shape_cast %11 : vector<64x128xf32> to vector<8x8x128xf32>
    %20 = vector.shape_cast %17 : vector<8x128xf32> to vector<8x1x128xf32>
    %21 = vector.broadcast %20 : vector<8x1x128xf32> to vector<8x8x128xf32>
    %22 = arith.mulf %18, %21 : vector<8x8x128xf32>
    %cst_19 = arith.constant dense<0.000000e+00> : vector<8x8xf32>
    %23 = vector.multi_reduction <add>, %22, %cst_19 [2] : vector<8x8x128xf32> to vector<8x8xf32>
    %cst_20 = arith.constant 0.176776692 : f32
    %24 = vector.broadcast %cst_20 : f32 to vector<8x8xf32>
    %25 = arith.mulf %23, %24 : vector<8x8xf32>
    %cst_21 = arith.constant dense<0xFF800000> : vector<8xf32>
    %26 = vector.multi_reduction <maximumf>, %25, %cst_21 [1] : vector<8x8xf32> to vector<8xf32>
    %27 = vector.shape_cast %26 : vector<8xf32> to vector<8x1xf32>
    %28 = vector.broadcast %27 : vector<8x1xf32> to vector<8x8xf32>
    %29 = arith.subf %25, %28 : vector<8x8xf32>
    %30 = math.exp %29 : vector<8x8xf32>
    %cst_22 = arith.constant dense<0.000000e+00> : vector<8xf32>
    %31 = vector.multi_reduction <add>, %30, %cst_22 [1] : vector<8x8xf32> to vector<8xf32>
    %32 = vector.shape_cast %31 : vector<8xf32> to vector<8x1xf32>
    %33 = vector.shape_cast %30 : vector<8x8xf32> to vector<8x8x1xf32>
    %34 = vector.broadcast %33 : vector<8x8x1xf32> to vector<8x8x128xf32>
    %35 = arith.mulf %34, %18 : vector<8x8x128xf32>
    %cst_23 = arith.constant dense<0.000000e+00> : vector<8x128xf32>
    %36 = vector.multi_reduction <add>, %35, %cst_23 [1] : vector<8x8x128xf32> to vector<8x128xf32>
    %37 = tpu.reciprocal %32 {approx = true} : vector<8x1xf32> -> vector<8x1xf32>
    %38 = vector.broadcast %37 : vector<8x1xf32> to vector<8x128xf32>
    %39 = arith.mulf %36, %38 : vector<8x128xf32>
    %cst_24 = arith.constant dense<0xFF800000> : vector<8x128xf32>
    %40 = vector.multi_reduction <maximumf>, %19, %cst_24 [1] : vector<8x8x128xf32> to vector<8x128xf32>
    %41 = vector.shape_cast %40 : vector<8x128xf32> to vector<8x1x128xf32>
    %42 = vector.broadcast %41 : vector<8x1x128xf32> to vector<8x8x128xf32>
    %43 = arith.subf %19, %42 : vector<8x8x128xf32>
    %cst_25 = arith.constant 6.000000e+00 : f32
    %44 = vector.broadcast %cst_25 : f32 to vector<8x8x128xf32>
    %45 = arith.mulf %44, %43 : vector<8x8x128xf32>
    %46 = math.exp %45 : vector<8x8x128xf32>
    %cst_26 = arith.constant dense<0.000000e+00> : vector<8x128xf32>
    %47 = vector.multi_reduction <add>, %46, %cst_26 [1] : vector<8x8x128xf32> to vector<8x128xf32>
    %cst_27 = arith.constant 8.000000e+00 : f32
    %48 = vector.broadcast %cst_27 : f32 to vector<8x128xf32>
    %49 = arith.divf %47, %48 : vector<8x128xf32>
    %50 = math.log %49 : vector<8x128xf32>
    %cst_28 = arith.constant 0.166666672 : f32
    %51 = vector.broadcast %cst_28 : f32 to vector<8x128xf32>
    %52 = arith.mulf %51, %50 : vector<8x128xf32>
    %53 = arith.addf %40, %52 : vector<8x128xf32>
    %c0_29 = arith.constant 0 : index
    %c0_30 = arith.constant 0 : index
    %54 = vector.load %arg10[%c0_29, %c0_30] : memref<128x128xf32, #tpu.memory_space<vmem>>, vector<128x128xf32>
    %cst_31 = arith.constant dense<0.000000e+00> : vector<8x128xf32>
    %55 = tpu.matmul %39, %54, %cst_31 {dimension_numbers = #tpu.dot_dimension_numbers<[1], [0], [0], [1], [0, 0, 1, 1], [], []>} : vector<8x128xf32>, vector<128x128xf32>, vector<8x128xf32> -> vector<8x128xf32>
    %c0_32 = arith.constant 0 : index
    %c0_33 = arith.constant 0 : index
    %56 = vector.load %arg11[%c0_32, %c0_33] : memref<128x128xf32, #tpu.memory_space<vmem>>, vector<128x128xf32>
    %cst_34 = arith.constant dense<0.000000e+00> : vector<8x128xf32>
    %57 = tpu.matmul %53, %56, %cst_34 {dimension_numbers = #tpu.dot_dimension_numbers<[1], [0], [0], [1], [0, 0, 1, 1], [], []>} : vector<8x128xf32>, vector<128x128xf32>, vector<8x128xf32> -> vector<8x128xf32>
    %58 = arith.addf %55, %57 : vector<8x128xf32>
    %c0_35 = arith.constant 0 : index
    %c0_36 = arith.constant 0 : index
    %59 = vector.load %arg12[%c0_35, %c0_36] : memref<128x128xf32, #tpu.memory_space<vmem>>, vector<128x128xf32>
    %cst_37 = arith.constant dense<0.000000e+00> : vector<8x128xf32>
    %60 = tpu.matmul %17, %59, %cst_37 {dimension_numbers = #tpu.dot_dimension_numbers<[1], [0], [0], [1], [0, 0, 1, 1], [], []>} : vector<8x128xf32>, vector<128x128xf32>, vector<8x128xf32> -> vector<8x128xf32>
    %61 = arith.addf %58, %60 : vector<8x128xf32>
    %c0_38 = arith.constant 0 : index
    %c0_39 = arith.constant 0 : index
    %62 = vector.load %arg13[%c0_38, %c0_39] : memref<1x128xf32, #tpu.memory_space<vmem>>, vector<1x128xf32>
    %63 = vector.broadcast %62 : vector<1x128xf32> to vector<8x128xf32>
    %64 = arith.addf %61, %63 : vector<8x128xf32>
    %c0_40 = arith.constant 0 : index
    %c0_41 = arith.constant 0 : index
    %65 = vector.load %arg14[%c0_40, %c0_41] : memref<8x128xf32, #tpu.memory_space<vmem>>, vector<8x128xf32>
    tpu.vector_store %arg14[%c0_40, %c0_41], %64 {strides = array<i32>} : memref<8x128xf32, #tpu.memory_space<vmem>>, vector<8x128xf32>,
    return
  }
  func.func @transform_0(%arg0: i32) -> (i32, i32) {
    %c0_i32 = arith.constant 0 : i32
    %c0_i32_0 = arith.constant 0 : i32
    return %arg0, %c0_i32 : i32, i32
  }
  func.func @transform_1(%arg0: i32) -> (i32, i32) {
    %c0_i32 = arith.constant 0 : i32
    %c0_i32_0 = arith.constant 0 : i32
    return %arg0, %c0_i32 : i32, i32
  }
  func.func @transform_2(%arg0: i32) -> (i32, i32) {
    %c0_i32 = arith.constant 0 : i32
    %c0_i32_0 = arith.constant 0 : i32
    return %arg0, %c0_i32 : i32, i32
  }
  func.func @transform_3(%arg0: i32) -> (i32, i32) {
    %c0_i32 = arith.constant 0 : i32
    %c0_i32_0 = arith.constant 0 : i32
    %c0_i32_1 = arith.constant 0 : i32
    return %c0_i32, %c0_i32_0 : i32, i32
  }
  func.func @transform_4(%arg0: i32) -> (i32, i32) {
    %c0_i32 = arith.constant 0 : i32
    %c0_i32_0 = arith.constant 0 : i32
    %c0_i32_1 = arith.constant 0 : i32
    return %c0_i32, %c0_i32_0 : i32, i32
  }
  func.func @transform_5(%arg0: i32) -> (i32, i32) {
    %c0_i32 = arith.constant 0 : i32
    %c0_i32_0 = arith.constant 0 : i32
    %c0_i32_1 = arith.constant 0 : i32
    return %c0_i32, %c0_i32_0 : i32, i32
  }
  func.func @transform_6(%arg0: i32) -> (i32, i32) {
    %c0_i32 = arith.constant 0 : i32
    %c0_i32_0 = arith.constant 0 : i32
    %c0_i32_1 = arith.constant 0 : i32
    return %c0_i32, %c0_i32_0 : i32, i32
  }
  func.func @transform_7(%arg0: i32) -> (i32, i32) {
    %c0_i32 = arith.constant 0 : i32
    %c0_i32_0 = arith.constant 0 : i32
    %c0_i32_1 = arith.constant 0 : i32
    return %c0_i32, %c0_i32_0 : i32, i32
  }
  func.func @transform_8(%arg0: i32) -> (i32, i32) {
    %c0_i32 = arith.constant 0 : i32
    %c0_i32_0 = arith.constant 0 : i32
    %c0_i32_1 = arith.constant 0 : i32
    return %c0_i32, %c0_i32_0 : i32, i32
  }
  func.func @transform_9(%arg0: i32) -> (i32, i32) {
    %c0_i32 = arith.constant 0 : i32
    %c0_i32_0 = arith.constant 0 : i32
    %c0_i32_1 = arith.constant 0 : i32
    return %c0_i32, %c0_i32_0 : i32, i32
  }
  func.func @transform_10(%arg0: i32) -> (i32, i32) {
    %c0_i32 = arith.constant 0 : i32
    %c0_i32_0 = arith.constant 0 : i32
    %c0_i32_1 = arith.constant 0 : i32
    return %c0_i32, %c0_i32_0 : i32, i32
  }
  func.func @transform_11(%arg0: i32) -> (i32, i32) {
    %c0_i32 = arith.constant 0 : i32
    %c0_i32_0 = arith.constant 0 : i32
    %c0_i32_1 = arith.constant 0 : i32
    return %c0_i32, %c0_i32_0 : i32, i32
  }
  func.func @transform_12(%arg0: i32) -> (i32, i32) {
    %c0_i32 = arith.constant 0 : i32
    %c0_i32_0 = arith.constant 0 : i32
    %c0_i32_1 = arith.constant 0 : i32
    return %c0_i32, %c0_i32_0 : i32, i32
  }
  func.func @transform_13(%arg0: i32) -> (i32, i32) {
    %c0_i32 = arith.constant 0 : i32
    %c0_i32_0 = arith.constant 0 : i32
    return %arg0, %c0_i32 : i32, i32
  }
}

</mosaic_0001>

<llo_original>
// kernel: new_model_forward.4
$region0: #{new_model_forward.4}
  #allocation0 [shape = 'u32[]', space=smem, size = 0x4, offset = 0x4, fixed_abs, tag = 'smem constant byte address 0x4 - core index']
  #allocation1 [shape = 'u32[144,128]{1,0:T(1,128)}', space=vmem, size = 0x12000, scoped, tag = 'internal scratch']
  %s0 = inlined_call_operand.vmem [shape: f32[64,128], index: 0, kind: input, shape index: {}]
  %s1 = inlined_call_operand.vmem [shape: f32[64,32], index: 1, kind: input, shape index: {}]
  %s2 = inlined_call_operand.vmem [shape: f32[8,16], index: 2, kind: input, shape index: {}]
  %s3 = inlined_call_operand.vmem [shape: f32[128,128], index: 3, kind: input, shape index: {}]
  %s4 = inlined_call_operand.vmem [shape: f32[1,128], index: 4, kind: input, shape index: {}]
  %s5 = inlined_call_operand.vmem [shape: f32[32,128], index: 5, kind: input, shape index: {}]
  %s6 = inlined_call_operand.vmem [shape: f32[1,128], index: 6, kind: input, shape index: {}]
  %s7 = inlined_call_operand.vmem [shape: f32[16,128], index: 7, kind: input, shape index: {}]
  %s8 = inlined_call_operand.vmem [shape: f32[1,128], index: 8, kind: input, shape index: {}]
  %s9 = inlined_call_operand.vmem [shape: f32[128,128], index: 9, kind: input, shape index: {}]
  %s10 = inlined_call_operand.vmem [shape: f32[128,128], index: 10, kind: input, shape index: {}]
  %s11 = inlined_call_operand.vmem [shape: f32[128,128], index: 11, kind: input, shape index: {}]
  %s12 = inlined_call_operand.vmem [shape: f32[1,128], index: 12, kind: input, shape index: {}]
  %s13 = inlined_call_operand.vmem [shape: f32[8,128], index: 13, kind: output, shape index: {}]
  %s14 = sld [smem:[#allocation0]]
  $region62: #{new_model_forward.4} parent=0
    _
  %s16 = ssub.s32 1, %s14
  %s17 = scalar_select 0, %s16, %s14
  // Predicated region
  $region2: #{new_model_forward.4} parent=0 // pred_check
    _
  $region3: #{new_model_forward.4} parent=0 // pred_check_branch
    %19 = sbr.rel (0) target = $region5
  $region4: #{new_model_forward.4} parent=0 // pred_region
    _
  $region5: #{new_model_forward.4} parent=0 // pred_fallthru
    _
  // Predicated region
  $region6: #{new_model_forward.4} parent=0 // pred_check
    _
  $region7: #{new_model_forward.4} parent=0 // pred_check_branch
    %21 = sbr.rel (0) target = $region9
  $region8: #{new_model_forward.4} parent=0 // pred_region
    _
  $region9: #{new_model_forward.4} parent=0 // pred_fallthru
    _
  // Predicated region
  $region10: #{new_model_forward.4} parent=0 // pred_check
    _
  $region11: #{new_model_forward.4} parent=0 // pred_check_branch
    %23 = sbr.rel (0) target = $region13
  $region12: #{new_model_forward.4} parent=0 // pred_region
    _
  $region13: #{new_model_forward.4} parent=0 // pred_fallthru
    _
  // Predicated region
  $region14: #{new_model_forward.4} parent=0 // pred_check
    _
  $region15: #{new_model_forward.4} parent=0 // pred_check_branch
    %25 = sbr.rel (0) target = $region17
  $region16: #{new_model_forward.4} parent=0 // pred_region
    _
  $region17: #{new_model_forward.4} parent=0 // pred_fallthru
    _
  // Predicated region
  $region18: #{new_model_forward.4} parent=0 // pred_check
    _
  $region19: #{new_model_forward.4} parent=0 // pred_check_branch
    %27 = sbr.rel (0) target = $region21
  $region20: #{new_model_forward.4} parent=0 // pred_region
    _
  $region21: #{new_model_forward.4} parent=0 // pred_fallthru
    _
  // Predicated region
  $region22: #{new_model_forward.4} parent=0 // pred_check
    _
  $region23: #{new_model_forward.4} parent=0 // pred_check_branch
    %29 = sbr.rel (0) target = $region25
  $region24: #{new_model_forward.4} parent=0 // pred_region
    _
  $region25: #{new_model_forward.4} parent=0 // pred_fallthru
    _
  // Predicated region
  $region26: #{new_model_forward.4} parent=0 // pred_check
    _
  $region27: #{new_model_forward.4} parent=0 // pred_check_branch
    %31 = sbr.rel (0) target = $region29
  $region28: #{new_model_forward.4} parent=0 // pred_region
    _
  $region29: #{new_model_forward.4} parent=0 // pred_fallthru
    _
  // Predicated region
  $region30: #{new_model_forward.4} parent=0 // pred_check
    _
  $region31: #{new_model_forward.4} parent=0 // pred_check_branch
    %33 = sbr.rel (0) target = $region33
  $region32: #{new_model_forward.4} parent=0 // pred_region
    _
  $region33: #{new_model_forward.4} parent=0 // pred_fallthru
    _
  // Predicated region
  $region34: #{new_model_forward.4} parent=0 // pred_check
    _
  $region35: #{new_model_forward.4} parent=0 // pred_check_branch
    %35 = sbr.rel (0) target = $region37
  $region36: #{new_model_forward.4} parent=0 // pred_region
    _
  $region37: #{new_model_forward.4} parent=0 // pred_fallthru
    _
  // Predicated region
  $region38: #{new_model_forward.4} parent=0 // pred_check
    _
  $region39: #{new_model_forward.4} parent=0 // pred_check_branch
    %37 = sbr.rel (0) target = $region41
  $region40: #{new_model_forward.4} parent=0 // pred_region
    _
  $region41: #{new_model_forward.4} parent=0 // pred_fallthru
    _
  // Predicated region
  $region42: #{new_model_forward.4} parent=0 // pred_check
    _
  $region43: #{new_model_forward.4} parent=0 // pred_check_branch
    %39 = sbr.rel (0) target = $region45
  $region44: #{new_model_forward.4} parent=0 // pred_region
    _
  $region45: #{new_model_forward.4} parent=0 // pred_fallthru
    _
  // Predicated region
  $region46: #{new_model_forward.4} parent=0 // pred_check
    _
  $region47: #{new_model_forward.4} parent=0 // pred_check_branch
    %41 = sbr.rel (0) target = $region49
  $region48: #{new_model_forward.4} parent=0 // pred_region
    _
  $region49: #{new_model_forward.4} parent=0 // pred_fallthru
    _
  // Predicated region
  $region50: #{new_model_forward.4} parent=0 // pred_check
    _
  $region51: #{new_model_forward.4} parent=0 // pred_check_branch
    %43 = sbr.rel (0) target = $region53
  $region52: #{new_model_forward.4} parent=0 // pred_region
    _
  $region53: #{new_model_forward.4} parent=0 // pred_fallthru
    _
  %v44 = vld [vmem:[%s0] sm:$0xff]
  %v45 = vld [vmem:[%s0 + $0x8] sm:$0xff]
  %v46 = vld [vmem:[%s0 + $0x10] sm:$0xff]
  %v47 = vld [vmem:[%s0 + $0x18] sm:$0xff]
  %v48 = vld [vmem:[%s0 + $0x20] sm:$0xff]
  %v49 = vld [vmem:[%s0 + $0x28] sm:$0xff]
  %v50 = vld [vmem:[%s0 + $0x30] sm:$0xff]
  %v51 = vld [vmem:[%s0 + $0x38] sm:$0xff]
  %v52 = vld [vmem:[%s3] sm:$0xff]
  %v53 = vld [vmem:[%s3 + $0x8] sm:$0xff]
  %v54 = vld [vmem:[%s3 + $0x10] sm:$0xff]
  %v55 = vld [vmem:[%s3 + $0x18] sm:$0xff]
  %v56 = vld [vmem:[%s3 + $0x20] sm:$0xff]
  %v57 = vld [vmem:[%s3 + $0x28] sm:$0xff]
  %v58 = vld [vmem:[%s3 + $0x30] sm:$0xff]
  %v59 = vld [vmem:[%s3 + $0x38] sm:$0xff]
  %v60 = vld [vmem:[%s3 + $0x40] sm:$0xff]
  %v61 = vld [vmem:[%s3 + $0x48] sm:$0xff]
  %v62 = vld [vmem:[%s3 + $0x50] sm:$0xff]
  %v63 = vld [vmem:[%s3 + $0x58] sm:$0xff]
  %v64 = vld [vmem:[%s3 + $0x60] sm:$0xff]
  %v65 = vld [vmem:[%s3 + $0x68] sm:$0xff]
  %v66 = vld [vmem:[%s3 + $0x70] sm:$0xff]
  %v67 = vld [vmem:[%s3 + $0x78] sm:$0xff]
  %v68 = vld [vmem:[%s4] sm:$0x1]
  %v70 = vlaneseq
  %v71 = vshrl.u32 %v70, 7
  %v72 = vsub.s32 0, %v71
  %v73 = vrot.slane %v68, %v72
  %75 = vmatprep.subr.mxu0 0.0
  %76 = vmatpush1.msra.mxu0 %v52
  %77 = vmatprep.subr.mxu0 0.0
  %78 = vmatpush1.msra.mxu0 %v53
  %79 = vmatprep.subr.mxu0 0.0
  %80 = vmatpush1.msra.mxu0 %v54
  %81 = vmatprep.subr.mxu0 0.0
  %82 = vmatpush1.msra.mxu0 %v55
  %83 = vmatprep.subr.mxu0 0.0
  %84 = vmatpush1.msra.mxu0 %v56
  %85 = vmatprep.subr.mxu0 0.0
  %86 = vmatpush1.msra.mxu0 %v57
  %87 = vmatprep.subr.mxu0 0.0
  %88 = vmatpush1.msra.mxu0 %v58
  %89 = vmatprep.subr.mxu0 0.0
  %90 = vmatpush1.msra.mxu0 %v59
  %91 = vmatprep.subr.mxu0 0.0
  %92 = vmatpush1.msra.mxu0 %v60
  %93 = vmatprep.subr.mxu0 0.0
  %94 = vmatpush1.msra.mxu0 %v61
  %95 = vmatprep.subr.mxu0 0.0
  %96 = vmatpush1.msra.mxu0 %v62
  %97 = vmatprep.subr.mxu0 0.0
  %98 = vmatpush1.msra.mxu0 %v63
  %99 = vmatprep.subr.mxu0 0.0
  %100 = vmatpush1.msra.mxu0 %v64
  %101 = vmatprep.subr.mxu0 0.0
  %102 = vmatpush1.msra.mxu0 %v65
  %103 = vmatprep.subr.mxu0 0.0
  %104 = vmatpush1.msra.mxu0 %v66
  %105 = vmatprep.subr.mxu0 0.0
  %106 = vmatpush1.msra.mxu0 %v67
  %107 = vmatprep.subr.mxu0 0.0
  %108 = vmatpush1.msra.mxu0 0.0
  %109 = vmatprep.subr.mxu0 0.0
  %110 = vmatpush1.msra.mxu0 0.0
  %111 = vmatprep.subr.mxu0 0.0
  %112 = vmatpush1.msra.mxu0 0.0
  %113 = vmatprep.subr.mxu0 0.0
  %114 = vmatpush1.msra.mxu0 0.0
  %115 = vmatprep.subr.mxu0 0.0
  %116 = vmatpush1.msra.mxu0 0.0
  %117 = vmatprep.subr.mxu0 0.0
  %118 = vmatpush1.msra.mxu0 0.0
  %119 = vmatprep.subr.mxu0 0.0
  %120 = vmatpush1.msra.mxu0 0.0
  %121 = vmatprep.subr.mxu0 0.0
  %122 = vmatpush1.msra.mxu0 0.0
  %123 = vmatprep.subr.mxu0 0.0
  %124 = vmatpush1.msra.mxu0 0.0
  %125 = vmatprep.subr.mxu0 0.0
  %126 = vmatpush1.msra.mxu0 0.0
  %127 = vmatprep.subr.mxu0 0.0
  %128 = vmatpush1.msra.mxu0 0.0
  %129 = vmatprep.subr.mxu0 0.0
  %130 = vmatpush1.msra.mxu0 0.0
  %131 = vmatprep.subr.mxu0 0.0
  %132 = vmatpush1.msra.mxu0 0.0
  %133 = vmatprep.subr.mxu0 0.0
  %134 = vmatpush1.msra.mxu0 0.0
  %135 = vmatprep.subr.mxu0 0.0
  %136 = vmatpush1.msra.mxu0 0.0
  %137 = vmatprep.subr.mxu0 0.0
  %138 = vmatpush1.msra.mxu0 0.0
  %139 = vmatprep.mubr.f32.mxu0 0.0
  %140 = vmatmul.mubr.f32.gmra.mrb[0].mxu0 %v44
  %v141 = vpop.f32.mrb[0].mxu0
  %v142 = vadd.f32 %v73, %v141
  %v143 = vpop.f32.mrb[0].mxu0
  %144 = vmatprep.mubr.f32.mxu0 0.0
  %145 = vmatmul.mubr.f32.gmra.mrb[0].mxu0 %v45
  %v146 = vpop.f32.mrb[0].mxu0
  %v147 = vadd.f32 %v73, %v146
  %v148 = vpop.f32.mrb[0].mxu0
  %149 = vmatprep.mubr.f32.mxu0 0.0
  %150 = vmatmul.mubr.f32.gmra.mrb[0].mxu0 %v46
  %v151 = vpop.f32.mrb[0].mxu0
  %v152 = vadd.f32 %v73, %v151
  %v153 = vpop.f32.mrb[0].mxu0
  %154 = vmatprep.mubr.f32.mxu0 0.0
  %155 = vmatmul.mubr.f32.gmra.mrb[0].mxu0 %v47
  %v156 = vpop.f32.mrb[0].mxu0
  %v157 = vadd.f32 %v73, %v156
  %v158 = vpop.f32.mrb[0].mxu0
  %159 = vmatprep.mubr.f32.mxu0 0.0
  %160 = vmatmul.mubr.f32.gmra.mrb[0].mxu0 %v48
  %v161 = vpop.f32.mrb[0].mxu0
  %v162 = vadd.f32 %v73, %v161
  %v163 = vpop.f32.mrb[0].mxu0
  %164 = vmatprep.mubr.f32.mxu0 0.0
  %165 = vmatmul.mubr.f32.gmra.mrb[0].mxu0 %v49
  %v166 = vpop.f32.mrb[0].mxu0
  %v167 = vadd.f32 %v73, %v166
  %v168 = vpop.f32.mrb[0].mxu0
  %169 = vmatprep.mubr.f32.mxu0 0.0
  %170 = vmatmul.mubr.f32.gmra.mrb[0].mxu0 %v50
  %v171 = vpop.f32.mrb[0].mxu0
  %v172 = vadd.f32 %v73, %v171
  %v173 = vpop.f32.mrb[0].mxu0
  %174 = vmatprep.mubr.f32.mxu0 0.0
  %175 = vmatmul.mubr.f32.gmra.mrb[0].mxu0 %v51
  %v176 = vpop.f32.mrb[0].mxu0
  %v177 = vadd.f32 %v73, %v176
  %v178 = vpop.f32.mrb[0].mxu0
  %179 = vdwg.mxu0
  %v180 = vld [vmem:[%s1] sm:$0xff]
  %v181 = vld [vmem:[%s1 + $0x8] sm:$0xff]
  %v182 = vld [vmem:[%s1 + $0x10] sm:$0xff]
  %v183 = vld [vmem:[%s1 + $0x18] sm:$0xff]
  %v184 = vld [vmem:[%s1 + $0x20] sm:$0xff]
  %v185 = vld [vmem:[%s1 + $0x28] sm:$0xff]
  %v186 = vld [vmem:[%s1 + $0x30] sm:$0xff]
  %v187 = vld [vmem:[%s1 + $0x38] sm:$0xff]
  %v188 = vld [vmem:[%s5] sm:$0xff]
  %v189 = vld [vmem:[%s5 + $0x8] sm:$0xff]
  %v190 = vld [vmem:[%s5 + $0x10] sm:$0xff]
  %v191 = vld [vmem:[%s5 + $0x18] sm:$0xff]
  %v192 = vld [vmem:[%s6] sm:$0x1]
  %v194 = vlaneseq
  %v195 = vshrl.u32 %v194, 7
  %v196 = vsub.s32 0, %v195
  %v197 = vrot.slane %v192, %v196
  %vm199 = vcmask 261120
  %v201 = vsel %vm199, %v180, 0
  %v204 = vsel %vm199, %v181, 0
  %v207 = vsel %vm199, %v182, 0
  %v210 = vsel %vm199, %v183, 0
  %v213 = vsel %vm199, %v184, 0
  %v216 = vsel %vm199, %v185, 0
  %v219 = vsel %vm199, %v186, 0
  %v222 = vsel %vm199, %v187, 0
  %224 = vmatprep.subr.mxu0 0.0
  %225 = vmatpush1.msra.mxu0 %v188
  %226 = vmatprep.subr.mxu0 0.0
  %227 = vmatpush1.msra.mxu0 %v189
  %228 = vmatprep.subr.mxu0 0.0
  %229 = vmatpush1.msra.mxu0 %v190
  %230 = vmatprep.subr.mxu0 0.0
  %231 = vmatpush1.msra.mxu0 %v191
  %232 = vmatprep.subr.mxu0 0.0
  %233 = vmatpush1.msra.mxu0 0.0
  %234 = vmatprep.subr.mxu0 0.0
  %235 = vmatpush1.msra.mxu0 0.0
  %236 = vmatprep.subr.mxu0 0.0
  %237 = vmatpush1.msra.mxu0 0.0
  %238 = vmatprep.subr.mxu0 0.0
  %239 = vmatpush1.msra.mxu0 0.0
  %240 = vmatprep.subr.mxu0 0.0
  %241 = vmatpush1.msra.mxu0 0.0
  %242 = vmatprep.subr.mxu0 0.0
  %243 = vmatpush1.msra.mxu0 0.0
  %244 = vmatprep.subr.mxu0 0.0
  %245 = vmatpush1.msra.mxu0 0.0
  %246 = vmatprep.subr.mxu0 0.0
  %247 = vmatpush1.msra.mxu0 0.0
  %248 = vmatprep.subr.mxu0 0.0
  %249 = vmatpush1.msra.mxu0 0.0
  %250 = vmatprep.subr.mxu0 0.0
  %251 = vmatpush1.msra.mxu0 0.0
  %252 = vmatprep.subr.mxu0 0.0
  %253 = vmatpush1.msra.mxu0 0.0
  %254 = vmatprep.subr.mxu0 0.0
  %255 = vmatpush1.msra.mxu0 0.0
  %256 = vmatprep.subr.mxu0 0.0
  %257 = vmatpush1.msra.mxu0 0.0
  %258 = vmatprep.subr.mxu0 0.0
  %259 = vmatpush1.msra.mxu0 0.0
  %260 = vmatprep.subr.mxu0 0.0
  %261 = vmatpush1.msra.mxu0 0.0
  %262 = vmatprep.subr.mxu0 0.0
  %263 = vmatpush1.msra.mxu0 0.0
  %264 = vmatprep.subr.mxu0 0.0
  %265 = vmatpush1.msra.mxu0 0.0
  %266 = vmatprep.subr.mxu0 0.0
  %267 = vmatpush1.msra.mxu0 0.0
  %268 = vmatprep.subr.mxu0 0.0
  %269 = vmatpush1.msra.mxu0 0.0
  %270 = vmatprep.subr.mxu0 0.0
  %271 = vmatpush1.msra.mxu0 0.0
  %272 = vmatprep.subr.mxu0 0.0
  %273 = vmatpush1.msra.mxu0 0.0
  %274 = vmatprep.subr.mxu0 0.0
  %275 = vmatpush1.msra.mxu0 0.0
  %276 = vmatprep.subr.mxu0 0.0
  %277 = vmatpush1.msra.mxu0 0.0
  %278 = vmatprep.subr.mxu0 0.0
  %279 = vmatpush1.msra.mxu0 0.0
  %280 = vmatprep.subr.mxu0 0.0
  %281 = vmatpush1.msra.mxu0 0.0
  %282 = vmatprep.subr.mxu0 0.0
  %283 = vmatpush1.msra.mxu0 0.0
  %284 = vmatprep.subr.mxu0 0.0
  %285 = vmatpush1.msra.mxu0 0.0
  %286 = vmatprep.subr.mxu0 0.0
  %287 = vmatpush1.msra.mxu0 0.0
  %288 = vmatprep.mubr.f32.mxu0 0.0
  %289 = vmatmul.mubr.f32.gmra.mrb[0].mxu0 %v201
  %v290 = vpop.f32.mrb[0].mxu0
  %v291 = vadd.f32 %v197, %v290
  %v292 = vpop.f32.mrb[0].mxu0
  %293 = vmatprep.mubr.f32.mxu0 0.0
  %294 = vmatmul.mubr.f32.gmra.mrb[0].mxu0 %v204
  %v295 = vpop.f32.mrb[0].mxu0
  %v296 = vadd.f32 %v197, %v295
  %v297 = vpop.f32.mrb[0].mxu0
  %298 = vmatprep.mubr.f32.mxu0 0.0
  %299 = vmatmul.mubr.f32.gmra.mrb[0].mxu0 %v207
  %v300 = vpop.f32.mrb[0].mxu0
  %v301 = vadd.f32 %v197, %v300
  %v302 = vpop.f32.mrb[0].mxu0
  %303 = vmatprep.mubr.f32.mxu0 0.0
  %304 = vmatmul.mubr.f32.gmra.mrb[0].mxu0 %v210
  %v305 = vpop.f32.mrb[0].mxu0
  %v306 = vadd.f32 %v197, %v305
  %v307 = vpop.f32.mrb[0].mxu0
  %308 = vmatprep.mubr.f32.mxu0 0.0
  %309 = vmatmul.mubr.f32.gmra.mrb[0].mxu0 %v213
  %v310 = vpop.f32.mrb[0].mxu0
  %v311 = vadd.f32 %v197, %v310
  %v312 = vpop.f32.mrb[0].mxu0
  %313 = vmatprep.mubr.f32.mxu0 0.0
  %314 = vmatmul.mubr.f32.gmra.mrb[0].mxu0 %v216
  %v315 = vpop.f32.mrb[0].mxu0
  %v316 = vadd.f32 %v197, %v315
  %v317 = vpop.f32.mrb[0].mxu0
  %318 = vmatprep.mubr.f32.mxu0 0.0
  %319 = vmatmul.mubr.f32.gmra.mrb[0].mxu0 %v219
  %v320 = vpop.f32.mrb[0].mxu0
  %v321 = vadd.f32 %v197, %v320
  %v322 = vpop.f32.mrb[0].mxu0
  %323 = vmatprep.mubr.f32.mxu0 0.0
  %324 = vmatmul.mubr.f32.gmra.mrb[0].mxu0 %v222
  %v325 = vpop.f32.mrb[0].mxu0
  %v326 = vadd.f32 %v197, %v325
  %v327 = vpop.f32.mrb[0].mxu0
  %328 = vdwg.mxu0
  %v329 = vld [vmem:[%s2] sm:$0xff]
  %v330 = vld [vmem:[%s7] sm:$0xff]
  %v331 = vld [vmem:[%s7 + $0x8] sm:$0xff]
  %v332 = vld [vmem:[%s8] sm:$0x1]
  %v334 = vlaneseq
  %v335 = vshrl.u32 %v334, 7
  %v336 = vsub.s32 0, %v335
  %v337 = vrot.slane %v332, %v336
  %vm339 = vcmask 130048
  %v341 = vsel %vm339, %v329, 0
  %343 = vmatprep.subr.mxu0 0.0
  %344 = vmatpush1.msra.mxu0 %v330
  %345 = vmatprep.subr.mxu0 0.0
  %346 = vmatpush1.msra.mxu0 %v331
  %347 = vmatprep.subr.mxu0 0.0
  %348 = vmatpush1.msra.mxu0 0.0
  %349 = vmatprep.subr.mxu0 0.0
  %350 = vmatpush1.msra.mxu0 0.0
  %351 = vmatprep.subr.mxu0 0.0
  %352 = vmatpush1.msra.mxu0 0.0
  %353 = vmatprep.subr.mxu0 0.0
  %354 = vmatpush1.msra.mxu0 0.0
  %355 = vmatprep.subr.mxu0 0.0
  %356 = vmatpush1.msra.mxu0 0.0
  %357 = vmatprep.subr.mxu0 0.0
  %358 = vmatpush1.msra.mxu0 0.0
  %359 = vmatprep.subr.mxu0 0.0
  %360 = vmatpush1.msra.mxu0 0.0
  %361 = vmatprep.subr.mxu0 0.0
  %362 = vmatpush1.msra.mxu0 0.0
  %363 = vmatprep.subr.mxu0 0.0
  %364 = vmatpush1.msra.mxu0 0.0
  %365 = vmatprep.subr.mxu0 0.0
  %366 = vmatpush1.msra.mxu0 0.0
  %367 = vmatprep.subr.mxu0 0.0
  %368 = vmatpush1.msra.mxu0 0.0
  %369 = vmatprep.subr.mxu0 0.0
  %370 = vmatpush1.msra.mxu0 0.0
  %371 = vmatprep.subr.mxu0 0.0
  %372 = vmatpush1.msra.mxu0 0.0
  %373 = vmatprep.subr.mxu0 0.0
  %374 = vmatpush1.msra.mxu0 0.0
  %375 = vmatprep.subr.mxu0 0.0
  %376 = vmatpush1.msra.mxu0 0.0
  %377 = vmatprep.subr.mxu0 0.0
  %378 = vmatpush1.msra.mxu0 0.0
  %379 = vmatprep.subr.mxu0 0.0
  %380 = vmatpush1.msra.mxu0 0.0
  %381 = vmatprep.subr.mxu0 0.0
  %382 = vmatpush1.msra.mxu0 0.0
  %383 = vmatprep.subr.mxu0 0.0
  %384 = vmatpush1.msra.mxu0 0.0
  %385 = vmatprep.subr.mxu0 0.0
  %386 = vmatpush1.msra.mxu0 0.0
  %387 = vmatprep.subr.mxu0 0.0
  %388 = vmatpush1.msra.mxu0 0.0
  %389 = vmatprep.subr.mxu0 0.0
  %390 = vmatpush1.msra.mxu0 0.0
  %391 = vmatprep.subr.mxu0 0.0
  %392 = vmatpush1.msra.mxu0 0.0
  %393 = vmatprep.subr.mxu0 0.0
  %394 = vmatpush1.msra.mxu0 0.0
  %395 = vmatprep.subr.mxu0 0.0
  %396 = vmatpush1.msra.mxu0 0.0
  %397 = vmatprep.subr.mxu0 0.0
  %398 = vmatpush1.msra.mxu0 0.0
  %399 = vmatprep.subr.mxu0 0.0
  %400 = vmatpush1.msra.mxu0 0.0
  %401 = vmatprep.subr.mxu0 0.0
  %402 = vmatpush1.msra.mxu0 0.0
  %403 = vmatprep.subr.mxu0 0.0
  %404 = vmatpush1.msra.mxu0 0.0
  %405 = vmatprep.subr.mxu0 0.0
  %406 = vmatpush1.msra.mxu0 0.0
  %407 = vmatprep.mubr.f32.mxu0 0.0
  %408 = vmatmul.mubr.f32.gmra.mrb[0].mxu0 %v341
  %v409 = vpop.f32.mrb[0].mxu0
  %v410 = vadd.f32 %v337, %v409
  %v411 = vpop.f32.mrb[0].mxu0
  %412 = vdwg.mxu0
  %v414 = vcombine.high %v410, %v410
  %v416 = vunpack.c.l.s4 1966171168
  %v417 = vunpack.c.0.s8 %v416
  %v418 = vlaneseq
  %v419 = vshrl.u32 %v418, 7
  %v420 = vsub.s32 %v417, %v419
  %v421 = vrot.slane %v410, %v420
  %v423 = vunpack.c.l.s4 1966171168
  %v424 = vunpack.c.0.s8 %v423
  %v425 = vlaneseq
  %v426 = vshrl.u32 %v425, 7
  %v427 = vsub.s32 %v424, %v426
  %v428 = vrot.slane %v414, %v427
  %v429 = vcombine.high %v421, %v421
  %v430 = vcombine.high %v428, %v428
  %v432 = vunpack.c.l.s4 1966171168
  %v433 = vunpack.c.0.s8 %v432
  %v434 = vlaneseq
  %v435 = vshrl.u32 %v434, 7
  %v436 = vsub.s32 %v433, %v435
  %v437 = vrot.slane %v421, %v436
  %v439 = vunpack.c.l.s4 1966171168
  %v440 = vunpack.c.0.s8 %v439
  %v441 = vlaneseq
  %v442 = vshrl.u32 %v441, 7
  %v443 = vsub.s32 %v440, %v442
  %v444 = vrot.slane %v428, %v443
  %v446 = vunpack.c.l.s4 1966171168
  %v447 = vunpack.c.0.s8 %v446
  %v448 = vlaneseq
  %v449 = vshrl.u32 %v448, 7
  %v450 = vsub.s32 %v447, %v449
  %v451 = vrot.slane %v429, %v450
  %v453 = vunpack.c.l.s4 1966171168
  %v454 = vunpack.c.0.s8 %v453
  %v455 = vlaneseq
  %v456 = vshrl.u32 %v455, 7
  %v457 = vsub.s32 %v454, %v456
  %v458 = vrot.slane %v430, %v457
  %v459 = vcombine.high %v437, %v437
  %v460 = vcombine.high %v444, %v444
  %v461 = vcombine.high %v451, %v451
  %v462 = vcombine.high %v458, %v458
  %v463 = vlaneseq
  %v464 = vshrl.u32 %v463, 7
  %v465 = vsub.s32 0, %v464
  %v466 = vrot.slane %v437, %v465
  %v467 = vlaneseq
  %v468 = vshrl.u32 %v467, 7
  %v469 = vsub.s32 0, %v468
  %v470 = vrot.slane %v451, %v469
  %v471 = vlaneseq
  %v472 = vshrl.u32 %v471, 7
  %v473 = vsub.s32 0, %v472
  %v474 = vrot.slane %v459, %v473
  %v475 = vlaneseq
  %v476 = vshrl.u32 %v475, 7
  %v477 = vsub.s32 0, %v476
  %v478 = vrot.slane %v461, %v477
  %v479 = vlaneseq
  %v480 = vshrl.u32 %v479, 7
  %v481 = vsub.s32 0, %v480
  %v482 = vrot.slane %v444, %v481
  %v483 = vlaneseq
  %v484 = vshrl.u32 %v483, 7
  %v485 = vsub.s32 0, %v484
  %v486 = vrot.slane %v458, %v485
  %v487 = vlaneseq
  %v488 = vshrl.u32 %v487, 7
  %v489 = vsub.s32 0, %v488
  %v490 = vrot.slane %v460, %v489
  %v491 = vlaneseq
  %v492 = vshrl.u32 %v491, 7
  %v493 = vsub.s32 0, %v492
  %v494 = vrot.slane %v462, %v493
  %v503 = vmul.f32 %v142, %v466
  %v504 = vmul.f32 %v147, %v470
  %v505 = vmul.f32 %v152, %v474
  %v506 = vmul.f32 %v157, %v478
  %v507 = vmul.f32 %v162, %v482
  %v508 = vmul.f32 %v167, %v486
  %v509 = vmul.f32 %v172, %v490
  %v510 = vmul.f32 %v177, %v494
  %511 = vadd.xlane.f32.xlu0 %v503
  %v512 = vpop.xlane.xlu0 %511
  %513 = vadd.xlane.f32.xlu0 %v504
  %v514 = vpop.xlane.xlu0 %513
  %515 = vadd.xlane.f32.xlu0 %v505
  %v516 = vpop.xlane.xlu0 %515
  %517 = vadd.xlane.f32.xlu0 %v506
  %v518 = vpop.xlane.xlu0 %517
  %519 = vadd.xlane.f32.xlu0 %v507
  %v520 = vpop.xlane.xlu0 %519
  %521 = vadd.xlane.f32.xlu0 %v508
  %v522 = vpop.xlane.xlu0 %521
  %523 = vadd.xlane.f32.xlu0 %v509
  %v524 = vpop.xlane.xlu0 %523
  %525 = vadd.xlane.f32.xlu0 %v510
  %v526 = vpop.xlane.xlu0 %525
  %v527 = vmul.f32 %v512, 0.17677669
  %v528 = vmul.f32 %v514, 0.17677669
  %v529 = vmul.f32 %v516, 0.17677669
  %v530 = vmul.f32 %v518, 0.17677669
  %v531 = vmul.f32 %v520, 0.17677669
  %v532 = vmul.f32 %v522, 0.17677669
  %v533 = vmul.f32 %v524, 0.17677669
  %v534 = vmul.f32 %v526, 0.17677669
  %v543 = vlaneseq
  %v544 = vand.u32 %v543, 127
  %v545 = vlaneseq
  %v546 = vshrl.u32 %v545, 7
  %v547 = vsub.s32 %v544, %v546
  %v548 = vrot.slane %v527, %v547
  %v549 = vlaneseq
  %v550 = vshrl.u32 %v549, 7
  %v551 = vsub.s32 %v544, %v550
  %v552 = vrot.slane %v528, %v551
  %v553 = vlaneseq
  %v554 = vshrl.u32 %v553, 7
  %v555 = vsub.s32 %v544, %v554
  %v556 = vrot.slane %v529, %v555
  %v557 = vlaneseq
  %v558 = vshrl.u32 %v557, 7
  %v559 = vsub.s32 %v544, %v558
  %v560 = vrot.slane %v530, %v559
  %v561 = vlaneseq
  %v562 = vshrl.u32 %v561, 7
  %v563 = vsub.s32 %v544, %v562
  %v564 = vrot.slane %v531, %v563
  %v565 = vlaneseq
  %v566 = vshrl.u32 %v565, 7
  %v567 = vsub.s32 %v544, %v566
  %v568 = vrot.slane %v532, %v567
  %v569 = vlaneseq
  %v570 = vshrl.u32 %v569, 7
  %v571 = vsub.s32 %v544, %v570
  %v572 = vrot.slane %v533, %v571
  %v573 = vlaneseq
  %v574 = vshrl.u32 %v573, 7
  %v575 = vsub.s32 %v544, %v574
  %v576 = vrot.slane %v534, %v575
  %vm577 = vcmask 1041409
  %v578 = vsel %vm577, %v552, %v548
  %vm579 = vcmask 1042434
  %v580 = vsel %vm579, %v556, %v578
  %vm581 = vcmask 1043459
  %v582 = vsel %vm581, %v560, %v580
  %vm583 = vcmask 1044484
  %v584 = vsel %vm583, %v564, %v582
  %vm585 = vcmask 1045509
  %v586 = vsel %vm585, %v568, %v584
  %vm587 = vcmask 1046534
  %v588 = vsel %vm587, %v572, %v586
  %vm589 = vcmask 1047559
  %v590 = vsel %vm589, %v576, %v588
  %vm592 = vcmask 64512
  %v593 = vsel %vm592, %v590, -inf
  %594 = vmax.xlane.f32.xlu0 %v593
  %v595 = vpop.xlane.xlu0 %594
  %v597 = vlaneseq
  %v598 = vshrl.u32 %v597, 7
  %v599 = vsub.s32 0, %v598
  %v600 = vrot.slane %v595, %v599
  %v601 = vlaneseq
  %v602 = vshrl.u32 %v601, 7
  %v603 = vsub.s32 1, %v602
  %v604 = vrot.slane %v595, %v603
  %v605 = vlaneseq
  %v606 = vshrl.u32 %v605, 7
  %v607 = vsub.s32 2, %v606
  %v608 = vrot.slane %v595, %v607
  %v609 = vlaneseq
  %v610 = vshrl.u32 %v609, 7
  %v611 = vsub.s32 3, %v610
  %v612 = vrot.slane %v595, %v611
  %v613 = vlaneseq
  %v614 = vshrl.u32 %v613, 7
  %v615 = vsub.s32 4, %v614
  %v616 = vrot.slane %v595, %v615
  %v617 = vlaneseq
  %v618 = vshrl.u32 %v617, 7
  %v619 = vsub.s32 5, %v618
  %v620 = vrot.slane %v595, %v619
  %v621 = vlaneseq
  %v622 = vshrl.u32 %v621, 7
  %v623 = vsub.s32 6, %v622
  %v624 = vrot.slane %v595, %v623
  %v625 = vlaneseq
  %v626 = vshrl.u32 %v625, 7
  %v627 = vsub.s32 7, %v626
  %v628 = vrot.slane %v595, %v627
  %v637 = vsub.f32 %v527, %v600
  %v638 = vsub.f32 %v528, %v604
  %v639 = vsub.f32 %v529, %v608
  %v640 = vsub.f32 %v530, %v612
  %v641 = vsub.f32 %v531, %v616
  %v642 = vsub.f32 %v532, %v620
  %v643 = vsub.f32 %v533, %v624
  %v644 = vsub.f32 %v534, %v628
  %v645 = vmul.f32 %v637, 1.442695
  %v646 = vpow.pop %v645
  %v647 = vmul.f32 %v638, 1.442695
  %v648 = vpow.pop %v647
  %v649 = vmul.f32 %v639, 1.442695
  %v650 = vpow.pop %v649
  %v651 = vmul.f32 %v640, 1.442695
  %v652 = vpow.pop %v651
  %v653 = vmul.f32 %v641, 1.442695
  %v654 = vpow.pop %v653
  %v655 = vmul.f32 %v642, 1.442695
  %v656 = vpow.pop %v655
  %v657 = vmul.f32 %v643, 1.442695
  %v658 = vpow.pop %v657
  %v659 = vmul.f32 %v644, 1.442695
  %v660 = vpow.pop %v659
  %669 = vset.pattern.permute.xlu0 0
  %670 = vperm.xlu0 %669, %v646
  %v671 = vpop.permute.xlu0 %670
  %672 = vset.pattern.permute.xlu0 0
  %673 = vperm.xlu0 %672, %v648
  %v674 = vpop.permute.xlu0 %673
  %675 = vset.pattern.permute.xlu0 0
  %676 = vperm.xlu0 %675, %v650
  %v677 = vpop.permute.xlu0 %676
  %678 = vset.pattern.permute.xlu0 0
  %679 = vperm.xlu0 %678, %v652
  %v680 = vpop.permute.xlu0 %679
  %681 = vset.pattern.permute.xlu0 0
  %682 = vperm.xlu0 %681, %v654
  %v683 = vpop.permute.xlu0 %682
  %684 = vset.pattern.permute.xlu0 0
  %685 = vperm.xlu0 %684, %v656
  %v686 = vpop.permute.xlu0 %685
  %687 = vset.pattern.permute.xlu0 0
  %688 = vperm.xlu0 %687, %v658
  %v689 = vpop.permute.xlu0 %688
  %690 = vset.pattern.permute.xlu0 0
  %691 = vperm.xlu0 %690, %v660
  %v692 = vpop.permute.xlu0 %691
  %v693 = vlaneseq
  %v694 = vshrl.u32 %v693, 7
  %v695 = vsub.s32 %v544, %v694
  %v696 = vrot.slane %v671, %v695
  %v697 = vlaneseq
  %v698 = vshrl.u32 %v697, 7
  %v699 = vsub.s32 %v544, %v698
  %v700 = vrot.slane %v674, %v699
  %v701 = vlaneseq
  %v702 = vshrl.u32 %v701, 7
  %v703 = vsub.s32 %v544, %v702
  %v704 = vrot.slane %v677, %v703
  %v705 = vlaneseq
  %v706 = vshrl.u32 %v705, 7
  %v707 = vsub.s32 %v544, %v706
  %v708 = vrot.slane %v680, %v707
  %v709 = vlaneseq
  %v710 = vshrl.u32 %v709, 7
  %v711 = vsub.s32 %v544, %v710
  %v712 = vrot.slane %v683, %v711
  %v713 = vlaneseq
  %v714 = vshrl.u32 %v713, 7
  %v715 = vsub.s32 %v544, %v714
  %v716 = vrot.slane %v686, %v715
  %v717 = vlaneseq
  %v718 = vshrl.u32 %v717, 7
  %v719 = vsub.s32 %v544, %v718
  %v720 = vrot.slane %v689, %v719
  %v721 = vlaneseq
  %v722 = vshrl.u32 %v721, 7
  %v723 = vsub.s32 %v544, %v722
  %v724 = vrot.slane %v692, %v723
  %v725 = vsel %vm577, %v700, %v696
  %v726 = vsel %vm579, %v704, %v725
  %v727 = vsel %vm581, %v708, %v726
  %v728 = vsel %vm583, %v712, %v727
  %v729 = vsel %vm585, %v716, %v728
  %v730 = vsel %vm587, %v720, %v729
  %v731 = vsel %vm589, %v724, %v730
  %v733 = vsel %vm592, %v731, 0.0
  %734 = vadd.xlane.f32.xlu0 %v733
  %v735 = vpop.xlane.xlu0 %734
  %v744 = vmul.f32 %v671, %v142
  %v745 = vmul.f32 %v674, %v147
  %v746 = vmul.f32 %v677, %v152
  %v747 = vmul.f32 %v680, %v157
  %v748 = vmul.f32 %v683, %v162
  %v749 = vmul.f32 %v686, %v167
  %v750 = vmul.f32 %v689, %v172
  %v751 = vmul.f32 %v692, %v177
  %v752 = vrot.slane %v744, 4
  %v753 = vadd.f32 %v744, %v752
  %v754 = vrot.slane %v753, 2
  %v755 = vadd.f32 %v753, %v754
  %v756 = vrot.slane %v755, 1
  %v757 = vadd.f32 %v755, %v756
  %v758 = vrot.slane %v745, 4
  %v759 = vadd.f32 %v745, %v758
  %v760 = vrot.slane %v759, 2
  %v761 = vadd.f32 %v759, %v760
  %v762 = vrot.slane %v761, 1
  %v763 = vadd.f32 %v761, %v762
  %v764 = vrot.slane %v746, 4
  %v765 = vadd.f32 %v746, %v764
  %v766 = vrot.slane %v765, 2
  %v767 = vadd.f32 %v765, %v766
  %v768 = vrot.slane %v767, 1
  %v769 = vadd.f32 %v767, %v768
  %v770 = vrot.slane %v747, 4
  %v771 = vadd.f32 %v747, %v770
  %v772 = vrot.slane %v771, 2
  %v773 = vadd.f32 %v771, %v772
  %v774 = vrot.slane %v773, 1
  %v775 = vadd.f32 %v773, %v774
  %v776 = vrot.slane %v748, 4
  %v777 = vadd.f32 %v748, %v776
  %v778 = vrot.slane %v777, 2
  %v779 = vadd.f32 %v777, %v778
  %v780 = vrot.slane %v779, 1
  %v781 = vadd.f32 %v779, %v780
  %v782 = vrot.slane %v749, 4
  %v783 = vadd.f32 %v749, %v782
  %v784 = vrot.slane %v783, 2
  %v785 = vadd.f32 %v783, %v784
  %v786 = vrot.slane %v785, 1
  %v787 = vadd.f32 %v785, %v786
  %v788 = vrot.slane %v750, 4
  %v789 = vadd.f32 %v750, %v788
  %v790 = vrot.slane %v789, 2
  %v791 = vadd.f32 %v789, %v790
  %v792 = vrot.slane %v791, 1
  %v793 = vadd.f32 %v791, %v792
  %v794 = vrot.slane %v751, 4
  %v795 = vadd.f32 %v751, %v794
  %v796 = vrot.slane %v795, 2
  %v797 = vadd.f32 %v795, %v796
  %v798 = vrot.slane %v797, 1
  %v799 = vadd.f32 %v797, %v798
  %v800 = vrcp.pop %v735
  %v802 = vrot.slane %v800, 1
  %v803 = vrot.slane %v800, 2
  %v804 = vrot.slane %v800, 3
  %v805 = vrot.slane %v800, 4
  %v806 = vrot.slane %v800, 5
  %v807 = vrot.slane %v800, 6
  %v808 = vrot.slane %v800, 7
  %v817 = vmul.f32 %v757, %v800
  %v818 = vmul.f32 %v763, %v802
  %v819 = vmul.f32 %v769, %v803
  %v820 = vmul.f32 %v775, %v804
  %v821 = vmul.f32 %v781, %v805
  %v822 = vmul.f32 %v787, %v806
  %v823 = vmul.f32 %v793, %v807
  %v824 = vmul.f32 %v799, %v808
  %v825 = vrot.slane %v291, 4
  %v826 = vmax.f32 %v291, %v825
  %v827 = vrot.slane %v826, 2
  %v828 = vmax.f32 %v826, %v827
  %v829 = vrot.slane %v828, 1
  %v830 = vmax.f32 %v828, %v829
  %v831 = vrot.slane %v296, 4
  %v832 = vmax.f32 %v296, %v831
  %v833 = vrot.slane %v832, 2
  %v834 = vmax.f32 %v832, %v833
  %v835 = vrot.slane %v834, 1
  %v836 = vmax.f32 %v834, %v835
  %v837 = vrot.slane %v301, 4
  %v838 = vmax.f32 %v301, %v837
  %v839 = vrot.slane %v838, 2
  %v840 = vmax.f32 %v838, %v839
  %v841 = vrot.slane %v840, 1
  %v842 = vmax.f32 %v840, %v841
  %v843 = vrot.slane %v306, 4
  %v844 = vmax.f32 %v306, %v843
  %v845 = vrot.slane %v844, 2
  %v846 = vmax.f32 %v844, %v845
  %v847 = vrot.slane %v846, 1
  %v848 = vmax.f32 %v846, %v847
  %v849 = vrot.slane %v311, 4
  %v850 = vmax.f32 %v311, %v849
  %v851 = vrot.slane %v850, 2
  %v852 = vmax.f32 %v850, %v851
  %v853 = vrot.slane %v852, 1
  %v854 = vmax.f32 %v852, %v853
  %v855 = vrot.slane %v316, 4
  %v856 = vmax.f32 %v316, %v855
  %v857 = vrot.slane %v856, 2
  %v858 = vmax.f32 %v856, %v857
  %v859 = vrot.slane %v858, 1
  %v860 = vmax.f32 %v858, %v859
  %v861 = vrot.slane %v321, 4
  %v862 = vmax.f32 %v321, %v861
  %v863 = vrot.slane %v862, 2
  %v864 = vmax.f32 %v862, %v863
  %v865 = vrot.slane %v864, 1
  %v866 = vmax.f32 %v864, %v865
  %v867 = vrot.slane %v326, 4
  %v868 = vmax.f32 %v326, %v867
  %v869 = vrot.slane %v868, 2
  %v870 = vmax.f32 %v868, %v869
  %v871 = vrot.slane %v870, 1
  %v872 = vmax.f32 %v870, %v871
  %v873 = vsub.f32 %v291, %v830
  %v874 = vsub.f32 %v296, %v836
  %v875 = vsub.f32 %v301, %v842
  %v876 = vsub.f32 %v306, %v848
  %v877 = vsub.f32 %v311, %v854
  %v878 = vsub.f32 %v316, %v860
  %v879 = vsub.f32 %v321, %v866
  %v880 = vsub.f32 %v326, %v872
  %v881 = vmul.f32 %v873, 6.0
  %v882 = vmul.f32 %v874, 6.0
  %v883 = vmul.f32 %v875, 6.0
  %v884 = vmul.f32 %v876, 6.0
  %v885 = vmul.f32 %v877, 6.0
  %v886 = vmul.f32 %v878, 6.0
  %v887 = vmul.f32 %v879, 6.0
  %v888 = vmul.f32 %v880, 6.0
  %v889 = vmul.f32 %v881, 1.442695
  %v890 = vpow.pop %v889
  %v891 = vmul.f32 %v882, 1.442695
  %v892 = vpow.pop %v891
  %v893 = vmul.f32 %v883, 1.442695
  %v894 = vpow.pop %v893
  %v895 = vmul.f32 %v884, 1.442695
  %v896 = vpow.pop %v895
  %v897 = vmul.f32 %v885, 1.442695
  %v898 = vpow.pop %v897
  %v899 = vmul.f32 %v886, 1.442695
  %v900 = vpow.pop %v899
  %v901 = vmul.f32 %v887, 1.442695
  %v902 = vpow.pop %v901
  %v903 = vmul.f32 %v888, 1.442695
  %v904 = vpow.pop %v903
  %v905 = vrot.slane %v890, 4
  %v906 = vadd.f32 %v890, %v905
  %v907 = vrot.slane %v906, 2
  %v908 = vadd.f32 %v906, %v907
  %v909 = vrot.slane %v908, 1
  %v910 = vadd.f32 %v908, %v909
  %v911 = vrot.slane %v892, 4
  %v912 = vadd.f32 %v892, %v911
  %v913 = vrot.slane %v912, 2
  %v914 = vadd.f32 %v912, %v913
  %v915 = vrot.slane %v914, 1
  %v916 = vadd.f32 %v914, %v915
  %v917 = vrot.slane %v894, 4
  %v918 = vadd.f32 %v894, %v917
  %v919 = vrot.slane %v918, 2
  %v920 = vadd.f32 %v918, %v919
  %v921 = vrot.slane %v920, 1
  %v922 = vadd.f32 %v920, %v921
  %v923 = vrot.slane %v896, 4
  %v924 = vadd.f32 %v896, %v923
  %v925 = vrot.slane %v924, 2
  %v926 = vadd.f32 %v924, %v925
  %v927 = vrot.slane %v926, 1
  %v928 = vadd.f32 %v926, %v927
  %v929 = vrot.slane %v898, 4
  %v930 = vadd.f32 %v898, %v929
  %v931 = vrot.slane %v930, 2
  %v932 = vadd.f32 %v930, %v931
  %v933 = vrot.slane %v932, 1
  %v934 = vadd.f32 %v932, %v933
  %v935 = vrot.slane %v900, 4
  %v936 = vadd.f32 %v900, %v935
  %v937 = vrot.slane %v936, 2
  %v938 = vadd.f32 %v936, %v937
  %v939 = vrot.slane %v938, 1
  %v940 = vadd.f32 %v938, %v939
  %v941 = vrot.slane %v902, 4
  %v942 = vadd.f32 %v902, %v941
  %v943 = vrot.slane %v942, 2
  %v944 = vadd.f32 %v942, %v943
  %v945 = vrot.slane %v944, 1
  %v946 = vadd.f32 %v944, %v945
  %v947 = vrot.slane %v904, 4
  %v948 = vadd.f32 %v904, %v947
  %v949 = vrot.slane %v948, 2
  %v950 = vadd.f32 %v948, %v949
  %v951 = vrot.slane %v950, 1
  %v952 = vadd.f32 %v950, %v951
  %v953 = vrcp.pop 8.0
  %v954 = vmul.f32 %v910, %v953
  %v955 = vmul.f32 %v916, %v953
  %v956 = vmul.f32 %v922, %v953
  %v957 = vmul.f32 %v928, %v953
  %v958 = vmul.f32 %v934, %v953
  %v959 = vmul.f32 %v940, %v953
  %v960 = vmul.f32 %v946, %v953
  %v961 = vmul.f32 %v952, %v953
  %v962 = vlog2.pop %v954
  %v963 = vmul.f32 %v962, 0.6931472
  %v964 = vlog2.pop %v955
  %v965 = vmul.f32 %v964, 0.6931472
  %v966 = vlog2.pop %v956
  %v967 = vmul.f32 %v966, 0.6931472
  %v968 = vlog2.pop %v957
  %v969 = vmul.f32 %v968, 0.6931472
  %v970 = vlog2.pop %v958
  %v971 = vmul.f32 %v970, 0.6931472
  %v972 = vlog2.pop %v959
  %v973 = vmul.f32 %v972, 0.6931472
  %v974 = vlog2.pop %v960
  %v975 = vmul.f32 %v974, 0.6931472
  %v976 = vlog2.pop %v961
  %v977 = vmul.f32 %v976, 0.6931472
  %v978 = vmul.f32 %v963, 0.16666667
  %v979 = vmul.f32 %v965, 0.16666667
  %v980 = vmul.f32 %v967, 0.16666667
  %v981 = vmul.f32 %v969, 0.16666667
  %v982 = vmul.f32 %v971, 0.16666667
  %v983 = vmul.f32 %v973, 0.16666667
  %v984 = vmul.f32 %v975, 0.16666667
  %v985 = vmul.f32 %v977, 0.16666667
  %v986 = vadd.f32 %v830, %v978
  %v987 = vadd.f32 %v836, %v979
  %v988 = vadd.f32 %v842, %v980
  %v989 = vadd.f32 %v848, %v981
  %v990 = vadd.f32 %v854, %v982
  %v991 = vadd.f32 %v860, %v983
  %v992 = vadd.f32 %v866, %v984
  %v993 = vadd.f32 %v872, %v985
  %v994 = vld [vmem:[%s9] sm:$0xff]
  %v995 = vld [vmem:[%s9 + $0x8] sm:$0xff]
  %v996 = vld [vmem:[%s9 + $0x10] sm:$0xff]
  %v997 = vld [vmem:[%s9 + $0x18] sm:$0xff]
  %v998 = vld [vmem:[%s9 + $0x20] sm:$0xff]
  %v999 = vld [vmem:[%s9 + $0x28] sm:$0xff]
  %v1000 = vld [vmem:[%s9 + $0x30] sm:$0xff]
  %v1001 = vld [vmem:[%s9 + $0x38] sm:$0xff]
  %v1002 = vld [vmem:[%s9 + $0x40] sm:$0xff]
  %v1003 = vld [vmem:[%s9 + $0x48] sm:$0xff]
  %v1004 = vld [vmem:[%s9 + $0x50] sm:$0xff]
  %v1005 = vld [vmem:[%s9 + $0x58] sm:$0xff]
  %v1006 = vld [vmem:[%s9 + $0x60] sm:$0xff]
  %v1007 = vld [vmem:[%s9 + $0x68] sm:$0xff]
  %v1008 = vld [vmem:[%s9 + $0x70] sm:$0xff]
  %v1009 = vld [vmem:[%s9 + $0x78] sm:$0xff]
  %v1010 = vld [vmem:[%s10] sm:$0xff]
  %v1011 = vld [vmem:[%s10 + $0x8] sm:$0xff]
  %v1012 = vld [vmem:[%s10 + $0x10] sm:$0xff]
  %v1013 = vld [vmem:[%s10 + $0x18] sm:$0xff]
  %v1014 = vld [vmem:[%s10 + $0x20] sm:$0xff]
  %v1015 = vld [vmem:[%s10 + $0x28] sm:$0xff]
  %v1016 = vld [vmem:[%s10 + $0x30] sm:$0xff]
  %v1017 = vld [vmem:[%s10 + $0x38] sm:$0xff]
  %v1018 = vld [vmem:[%s10 + $0x40] sm:$0xff]
  %v1019 = vld [vmem:[%s10 + $0x48] sm:$0xff]
  %v1020 = vld [vmem:[%s10 + $0x50] sm:$0xff]
  %v1021 = vld [vmem:[%s10 + $0x58] sm:$0xff]
  %v1022 = vld [vmem:[%s10 + $0x60] sm:$0xff]
  %v1023 = vld [vmem:[%s10 + $0x68] sm:$0xff]
  %v1024 = vld [vmem:[%s10 + $0x70] sm:$0xff]
  %v1025 = vld [vmem:[%s10 + $0x78] sm:$0xff]
  %v1034 = vsel %vm577, %v987, %v986
  %v1035 = vsel %vm579, %v988, %v1034
  %v1036 = vsel %vm581, %v989, %v1035
  %v1037 = vsel %vm583, %v990, %v1036
  %v1038 = vsel %vm585, %v991, %v1037
  %v1039 = vsel %vm587, %v992, %v1038
  %v1040 = vsel %vm589, %v993, %v1039
  %1042 = vmatprep.subr.mxu0 0.0
  %1043 = vmatpush1.msra.mxu0 %v1010
  %1044 = vmatprep.subr.mxu0 0.0
  %1045 = vmatpush1.msra.mxu0 %v1011
  %1046 = vmatprep.subr.mxu0 0.0
  %1047 = vmatpush1.msra.mxu0 %v1012
  %1048 = vmatprep.subr.mxu0 0.0
  %1049 = vmatpush1.msra.mxu0 %v1013
  %1050 = vmatprep.subr.mxu0 0.0
  %1051 = vmatpush1.msra.mxu0 %v1014
  %1052 = vmatprep.subr.mxu0 0.0
  %1053 = vmatpush1.msra.mxu0 %v1015
  %1054 = vmatprep.subr.mxu0 0.0
  %1055 = vmatpush1.msra.mxu0 %v1016
  %1056 = vmatprep.subr.mxu0 0.0
  %1057 = vmatpush1.msra.mxu0 %v1017
  %1058 = vmatprep.subr.mxu0 0.0
  %1059 = vmatpush1.msra.mxu0 %v1018
  %1060 = vmatprep.subr.mxu0 0.0
  %1061 = vmatpush1.msra.mxu0 %v1019
  %1062 = vmatprep.subr.mxu0 0.0
  %1063 = vmatpush1.msra.mxu0 %v1020
  %1064 = vmatprep.subr.mxu0 0.0
  %1065 = vmatpush1.msra.mxu0 %v1021
  %1066 = vmatprep.subr.mxu0 0.0
  %1067 = vmatpush1.msra.mxu0 %v1022
  %1068 = vmatprep.subr.mxu0 0.0
  %1069 = vmatpush1.msra.mxu0 %v1023
  %1070 = vmatprep.subr.mxu0 0.0
  %1071 = vmatpush1.msra.mxu0 %v1024
  %1072 = vmatprep.subr.mxu0 0.0
  %1073 = vmatpush1.msra.mxu0 %v1025
  %1074 = vmatprep.subr.mxu0 0.0
  %1075 = vmatpush1.msra.mxu0 0.0
  %1076 = vmatprep.subr.mxu0 0.0
  %1077 = vmatpush1.msra.mxu0 0.0
  %1078 = vmatprep.subr.mxu0 0.0
  %1079 = vmatpush1.msra.mxu0 0.0
  %1080 = vmatprep.subr.mxu0 0.0
  %1081 = vmatpush1.msra.mxu0 0.0
  %1082 = vmatprep.subr.mxu0 0.0
  %1083 = vmatpush1.msra.mxu0 0.0
  %1084 = vmatprep.subr.mxu0 0.0
  %1085 = vmatpush1.msra.mxu0 0.0
  %1086 = vmatprep.subr.mxu0 0.0
  %1087 = vmatpush1.msra.mxu0 0.0
  %1088 = vmatprep.subr.mxu0 0.0
  %1089 = vmatpush1.msra.mxu0 0.0
  %1090 = vmatprep.subr.mxu0 0.0
  %1091 = vmatpush1.msra.mxu0 0.0
  %1092 = vmatprep.subr.mxu0 0.0
  %1093 = vmatpush1.msra.mxu0 0.0
  %1094 = vmatprep.subr.mxu0 0.0
  %1095 = vmatpush1.msra.mxu0 0.0
  %1096 = vmatprep.subr.mxu0 0.0
  %1097 = vmatpush1.msra.mxu0 0.0
  %1098 = vmatprep.subr.mxu0 0.0
  %1099 = vmatpush1.msra.mxu0 0.0
  %1100 = vmatprep.subr.mxu0 0.0
  %1101 = vmatpush1.msra.mxu0 0.0
  %1102 = vmatprep.subr.mxu0 0.0
  %1103 = vmatpush1.msra.mxu0 0.0
  %1104 = vmatprep.subr.mxu0 0.0
  %1105 = vmatpush1.msra.mxu0 0.0
  %1106 = vmatprep.mubr.f32.mxu0 0.0
  %1107 = vmatmul.mubr.f32.gmra.mrb[0].mxu0 %v1040
  %v1108 = vpop.f32.mrb[0].mxu0
  %v1109 = vadd.f32 0.0, %v1108
  %v1110 = vpop.f32.mrb[0].mxu0
  %1111 = vdwg.mxu0
  %v1120 = vrot.slane %v818, 7
  %v1121 = vsel %vm577, %v1120, %v817
  %v1122 = vrot.slane %v819, 6
  %v1123 = vsel %vm579, %v1122, %v1121
  %v1124 = vrot.slane %v820, 5
  %v1125 = vsel %vm581, %v1124, %v1123
  %v1126 = vrot.slane %v821, 4
  %v1127 = vsel %vm583, %v1126, %v1125
  %v1128 = vrot.slane %v822, 3
  %v1129 = vsel %vm585, %v1128, %v1127
  %v1130 = vrot.slane %v823, 2
  %v1131 = vsel %vm587, %v1130, %v1129
  %v1132 = vrot.slane %v824, 1
  %v1133 = vsel %vm589, %v1132, %v1131
  %1135 = vmatprep.subr.mxu0 0.0
  %1136 = vmatpush1.msra.mxu0 %v994
  %1137 = vmatprep.subr.mxu0 0.0
  %1138 = vmatpush1.msra.mxu0 %v995
  %1139 = vmatprep.subr.mxu0 0.0
  %1140 = vmatpush1.msra.mxu0 %v996
  %1141 = vmatprep.subr.mxu0 0.0
  %1142 = vmatpush1.msra.mxu0 %v997
  %1143 = vmatprep.subr.mxu0 0.0
  %1144 = vmatpush1.msra.mxu0 %v998
  %1145 = vmatprep.subr.mxu0 0.0
  %1146 = vmatpush1.msra.mxu0 %v999
  %1147 = vmatprep.subr.mxu0 0.0
  %1148 = vmatpush1.msra.mxu0 %v1000
  %1149 = vmatprep.subr.mxu0 0.0
  %1150 = vmatpush1.msra.mxu0 %v1001
  %1151 = vmatprep.subr.mxu0 0.0
  %1152 = vmatpush1.msra.mxu0 %v1002
  %1153 = vmatprep.subr.mxu0 0.0
  %1154 = vmatpush1.msra.mxu0 %v1003
  %1155 = vmatprep.subr.mxu0 0.0
  %1156 = vmatpush1.msra.mxu0 %v1004
  %1157 = vmatprep.subr.mxu0 0.0
  %1158 = vmatpush1.msra.mxu0 %v1005
  %1159 = vmatprep.subr.mxu0 0.0
  %1160 = vmatpush1.msra.mxu0 %v1006
  %1161 = vmatprep.subr.mxu0 0.0
  %1162 = vmatpush1.msra.mxu0 %v1007
  %1163 = vmatprep.subr.mxu0 0.0
  %1164 = vmatpush1.msra.mxu0 %v1008
  %1165 = vmatprep.subr.mxu0 0.0
  %1166 = vmatpush1.msra.mxu0 %v1009
  %1167 = vmatprep.subr.mxu0 0.0
  %1168 = vmatpush1.msra.mxu0 0.0
  %1169 = vmatprep.subr.mxu0 0.0
  %1170 = vmatpush1.msra.mxu0 0.0
  %1171 = vmatprep.subr.mxu0 0.0
  %1172 = vmatpush1.msra.mxu0 0.0
  %1173 = vmatprep.subr.mxu0 0.0
  %1174 = vmatpush1.msra.mxu0 0.0
  %1175 = vmatprep.subr.mxu0 0.0
  %1176 = vmatpush1.msra.mxu0 0.0
  %1177 = vmatprep.subr.mxu0 0.0
  %1178 = vmatpush1.msra.mxu0 0.0
  %1179 = vmatprep.subr.mxu0 0.0
  %1180 = vmatpush1.msra.mxu0 0.0
  %1181 = vmatprep.subr.mxu0 0.0
  %1182 = vmatpush1.msra.mxu0 0.0
  %1183 = vmatprep.subr.mxu0 0.0
  %1184 = vmatpush1.msra.mxu0 0.0
  %1185 = vmatprep.subr.mxu0 0.0
  %1186 = vmatpush1.msra.mxu0 0.0
  %1187 = vmatprep.subr.mxu0 0.0
  %1188 = vmatpush1.msra.mxu0 0.0
  %1189 = vmatprep.subr.mxu0 0.0
  %1190 = vmatpush1.msra.mxu0 0.0
  %1191 = vmatprep.subr.mxu0 0.0
  %1192 = vmatpush1.msra.mxu0 0.0
  %1193 = vmatprep.subr.mxu0 0.0
  %1194 = vmatpush1.msra.mxu0 0.0
  %1195 = vmatprep.subr.mxu0 0.0
  %1196 = vmatpush1.msra.mxu0 0.0
  %1197 = vmatprep.subr.mxu0 0.0
  %1198 = vmatpush1.msra.mxu0 0.0
  %1199 = vmatprep.mubr.f32.mxu0 0.0
  %1200 = vmatmul.mubr.f32.gmra.mrb[0].mxu0 %v1133
  %v1201 = vpop.f32.mrb[0].mxu0
  %v1202 = vadd.f32 %v1109, %v1201
  %v1203 = vpop.f32.mrb[0].mxu0
  %1204 = vdwg.mxu0
  %v1205 = vld [vmem:[%s11] sm:$0xff]
  %v1206 = vld [vmem:[%s11 + $0x8] sm:$0xff]
  %v1207 = vld [vmem:[%s11 + $0x10] sm:$0xff]
  %v1208 = vld [vmem:[%s11 + $0x18] sm:$0xff]
  %v1209 = vld [vmem:[%s11 + $0x20] sm:$0xff]
  %v1210 = vld [vmem:[%s11 + $0x28] sm:$0xff]
  %v1211 = vld [vmem:[%s11 + $0x30] sm:$0xff]
  %v1212 = vld [vmem:[%s11 + $0x38] sm:$0xff]
  %v1213 = vld [vmem:[%s11 + $0x40] sm:$0xff]
  %v1214 = vld [vmem:[%s11 + $0x48] sm:$0xff]
  %v1215 = vld [vmem:[%s11 + $0x50] sm:$0xff]
  %v1216 = vld [vmem:[%s11 + $0x58] sm:$0xff]
  %v1217 = vld [vmem:[%s11 + $0x60] sm:$0xff]
  %v1218 = vld [vmem:[%s11 + $0x68] sm:$0xff]
  %v1219 = vld [vmem:[%s11 + $0x70] sm:$0xff]
  %v1220 = vld [vmem:[%s11 + $0x78] sm:$0xff]
  %1221 = vmatprep.subr.mxu0 0.0
  %1222 = vmatpush1.msra.mxu0 %v1205
  %1223 = vmatprep.subr.mxu0 0.0
  %1224 = vmatpush1.msra.mxu0 %v1206
  %1225 = vmatprep.subr.mxu0 0.0
  %1226 = vmatpush1.msra.mxu0 %v1207
  %1227 = vmatprep.subr.mxu0 0.0
  %1228 = vmatpush1.msra.mxu0 %v1208
  %1229 = vmatprep.subr.mxu0 0.0
  %1230 = vmatpush1.msra.mxu0 %v1209
  %1231 = vmatprep.subr.mxu0 0.0
  %1232 = vmatpush1.msra.mxu0 %v1210
  %1233 = vmatprep.subr.mxu0 0.0
  %1234 = vmatpush1.msra.mxu0 %v1211
  %1235 = vmatprep.subr.mxu0 0.0
  %1236 = vmatpush1.msra.mxu0 %v1212
  %1237 = vmatprep.subr.mxu0 0.0
  %1238 = vmatpush1.msra.mxu0 %v1213
  %1239 = vmatprep.subr.mxu0 0.0
  %1240 = vmatpush1.msra.mxu0 %v1214
  %1241 = vmatprep.subr.mxu0 0.0
  %1242 = vmatpush1.msra.mxu0 %v1215
  %1243 = vmatprep.subr.mxu0 0.0
  %1244 = vmatpush1.msra.mxu0 %v1216
  %1245 = vmatprep.subr.mxu0 0.0
  %1246 = vmatpush1.msra.mxu0 %v1217
  %1247 = vmatprep.subr.mxu0 0.0
  %1248 = vmatpush1.msra.mxu0 %v1218
  %1249 = vmatprep.subr.mxu0 0.0
  %1250 = vmatpush1.msra.mxu0 %v1219
  %1251 = vmatprep.subr.mxu0 0.0
  %1252 = vmatpush1.msra.mxu0 %v1220
  %1253 = vmatprep.subr.mxu0 0.0
  %1254 = vmatpush1.msra.mxu0 0.0
  %1255 = vmatprep.subr.mxu0 0.0
  %1256 = vmatpush1.msra.mxu0 0.0
  %1257 = vmatprep.subr.mxu0 0.0
  %1258 = vmatpush1.msra.mxu0 0.0
  %1259 = vmatprep.subr.mxu0 0.0
  %1260 = vmatpush1.msra.mxu0 0.0
  %1261 = vmatprep.subr.mxu0 0.0
  %1262 = vmatpush1.msra.mxu0 0.0
  %1263 = vmatprep.subr.mxu0 0.0
  %1264 = vmatpush1.msra.mxu0 0.0
  %1265 = vmatprep.subr.mxu0 0.0
  %1266 = vmatpush1.msra.mxu0 0.0
  %1267 = vmatprep.subr.mxu0 0.0
  %1268 = vmatpush1.msra.mxu0 0.0
  %1269 = vmatprep.subr.mxu0 0.0
  %1270 = vmatpush1.msra.mxu0 0.0
  %1271 = vmatprep.subr.mxu0 0.0
  %1272 = vmatpush1.msra.mxu0 0.0
  %1273 = vmatprep.subr.mxu0 0.0
  %1274 = vmatpush1.msra.mxu0 0.0
  %1275 = vmatprep.subr.mxu0 0.0
  %1276 = vmatpush1.msra.mxu0 0.0
  %1277 = vmatprep.subr.mxu0 0.0
  %1278 = vmatpush1.msra.mxu0 0.0
  %1279 = vmatprep.subr.mxu0 0.0
  %1280 = vmatpush1.msra.mxu0 0.0
  %1281 = vmatprep.subr.mxu0 0.0
  %1282 = vmatpush1.msra.mxu0 0.0
  %1283 = vmatprep.subr.mxu0 0.0
  %1284 = vmatpush1.msra.mxu0 0.0
  %1285 = vmatprep.mubr.f32.mxu0 0.0
  %1286 = vmatmul.mubr.f32.gmra.mrb[0].mxu0 %v410
  %v1287 = vpop.f32.mrb[0].mxu0
  %v1288 = vadd.f32 0.0, %v1287
  %v1289 = vpop.f32.mrb[0].mxu0
  %1290 = vdwg.mxu0
  %v1291 = vadd.f32 %v1202, %v1288
  %v1292 = vld [vmem:[%s12] sm:$0x1]
  %v1294 = vlaneseq
  %v1295 = vshrl.u32 %v1294, 7
  %v1296 = vsub.s32 0, %v1295
  %v1297 = vrot.slane %v1292, %v1296
  %v1299 = vadd.f32 %v1291, %v1297
  %1300 = vst [vmem:[%s13] sm:$0xff] %v1299
  // Predicated region
  $region54: #{new_model_forward.4} parent=0 // pred_check
    _
  $region55: #{new_model_forward.4} parent=0 // pred_check_branch
    %1302 = sbr.rel (0) target = $region57
  $region56: #{new_model_forward.4} parent=0 // pred_region
    _
  $region57: #{new_model_forward.4} parent=0 // pred_fallthru
    _
  // Predicated region
  $region58: #{new_model_forward.4} parent=0 // pred_check
    _
  $region59: #{new_model_forward.4} parent=0 // pred_check_branch
    %1304 = sbr.rel (0) target = $region61
  $region60: #{new_model_forward.4} parent=0 // pred_region
    _
  $region61: #{new_model_forward.4} parent=0 // pred_fallthru
    _

</llo_original>
